<compile_context>
chip_gen: v7x
topology: tpu7x:2x2x1
jax: 0.10.0
libtpu: 0.0.40
codegen_flags: <defaults>
</compile_context>

<pallas_src>
import functools

import jax
import jax.numpy as jnp
from jax.experimental import pallas as pl
from jax.experimental.pallas import tpu as pltpu


def _round_up(n: int, m: int) -> int:
    return ((n + m - 1) // m) * m


def _tensorcores_per_device() -> int:
    """Best-effort TensorCore count per device (megacore detection)."""
    try:
        kind = jax.devices()[0].device_kind.lower()
    except Exception:  # pragma: no cover - defensive
        return 1
    # v4 / v7x expose 2 TensorCores per device (megacore); v5e/v6e are single-TC.
    if "v4" in kind or "v7" in kind or "7x" in kind:
        return 2
    return 1


def _mlp_kernel(x_ref, w1_ref, b1_ref, w2_ref, b2_ref, w3_ref, b3_ref, o_ref):
    # Cast the streamed raw-f32 activations to the weight dtype inside the
    # kernel (bf16 path) -- no wrapper-side cast/pad pass over x in HBM.
    x = x_ref[...].astype(w1_ref.dtype)
    # Layer 1: (bt, 784) @ (784, H0) on the MXU, f32 accumulation.
    h = jnp.dot(x, w1_ref[...], preferred_element_type=jnp.float32)
    h = jnp.maximum(h + b1_ref[...], 0.0)               # bias + ReLU in f32 (VPU)
    # Layer 2.
    h = jnp.dot(h.astype(w2_ref.dtype), w2_ref[...],
                preferred_element_type=jnp.float32)
    h = jnp.maximum(h + b2_ref[...], 0.0)
    # Layer 3: output lanes padded to 128 -> unmasked, lane-dense stores.
    h = jnp.dot(h.astype(w3_ref.dtype), w3_ref[...],
                preferred_element_type=jnp.float32)
    o_ref[...] = (h + b3_ref[...]).astype(o_ref.dtype)


def prepare_params(params, use_bf16=True):
    """One-time packing of raw (in, out)-layout params for the kernel.

    - w1 / w2 kept unpadded (K=784 is 8- and 16-divisible; full-dim blocks).
    - w3 / b3 cols zero-padded 10 -> 128 so the output store is lane-dense.
    - weights optionally cast to bf16 (MXU bf16 path); biases stay f32.
    """
    w_dtype = jnp.bfloat16 if use_bf16 else jnp.float32
    w1, b1 = params["w1"], params["b1"]
    w2, b2 = params["w2"], params["b2"]
    w3, b3 = params["w3"], params["b3"]

    h1, d_out = w3.shape
    d_out_p = _round_up(d_out, 128)

    w3p = jnp.zeros((h1, d_out_p), w_dtype).at[:, :d_out].set(w3.astype(w_dtype))
    b3p = jnp.zeros((1, d_out_p), jnp.float32).at[:, :d_out].set(
        b3.astype(jnp.float32))

    return {
        "w1": w1.astype(w_dtype), "b1": b1.astype(jnp.float32),
        "w2": w2.astype(w_dtype), "b2": b2.astype(jnp.float32),
        "w3": w3p, "b3": b3p,
    }


@functools.partial(jax.jit, static_argnames=("batch_tile", "d_out"))
def base_neural_net_forward(x, kparams, batch_tile=None, d_out=10):
    """Fused forward pass of BaseNeuralNet in a single Pallas kernel.

    x:        (B, 784) float32   (passed to the kernel untouched)
    kparams:  output of prepare_params()
    returns:  (B, d_out) float32
    """
    w1, b1 = kparams["w1"], kparams["b1"]
    w2, b2 = kparams["w2"], kparams["b2"]
    w3, b3 = kparams["w3"], kparams["b3"]

    B, d_in = x.shape
    h0 = w1.shape[1]
    h1 = w2.shape[1]
    d_out_p = w3.shape[1]
    out_dtype = w3.dtype                       # bf16 writeback in bf16 mode

    cores = _tensorcores_per_device()

    # ---- batch tile selection -------------------------------------------------
    if batch_tile is None:
        batch_tile = 2048 if cores > 1 else 1024   # big tiles amortize step cost
    bt = min(batch_tile, _round_up(B, 8))
    bt = max(8, _round_up(bt, 8))

    # Megacore chips: >= 2 grid steps per TensorCore (so each core can overlap
    # the x-tile DMA with compute). Single-TC chips: 1 step is fine for small B.
    target_steps = 2 * cores if cores > 1 else 1
    while pl.cdiv(B, bt) < target_steps and bt > 8:
        bt = max(8, _round_up(bt // 2, 8))

    # VMEM-aware cap (keeps v5e / v7x comfortable even for large hidden sizes).
    param_bytes = sum(a.size * a.dtype.itemsize for a in (w1, b1, w2, b2, w3, b3))

    def _vmem_estimate(bt_):
        x_tile = 2 * bt_ * d_in * 4                       # double-buffered f32 x
        o_tile = 2 * bt_ * d_out_p * jnp.dtype(out_dtype).itemsize
        inter = bt_ * (h0 + h1) * 4                       # f32 intermediates
        return x_tile + o_tile + 2 * param_bytes + inter

    VMEM_BUDGET = 40 * 1024 * 1024
    while _vmem_estimate(bt) > VMEM_BUDGET and bt > 128:
        bt = max(8, _round_up(bt // 2, 8))

    grid = (pl.cdiv(B, bt),)     # ragged last tile handled by Pallas masking

    flops = 2 * B * (d_in * h0 + h0 * h1 + h1 * d_out_p)
    bytes_accessed = (
        B * d_in * 4
        + param_bytes
        + B * d_out_p * jnp.dtype(out_dtype).itemsize
    )

    out = pl.pallas_call(
        _mlp_kernel,
        out_shape=jax.ShapeDtypeStruct((B, d_out_p), out_dtype),
        grid_spec=pltpu.PrefetchScalarGridSpec(
            num_scalar_prefetch=0,
            grid=grid,
            in_specs=[
                # activations: raw f32, tiled over batch (only streamed operand);
                # last block dim == full array dim (784), so no lane padding needed
                pl.BlockSpec((bt, d_in), lambda i: (i, 0)),
                # weights / biases: full arrays, resident across all grid steps
                pl.BlockSpec((d_in, h0), lambda i: (0, 0)),
                pl.BlockSpec((1, h0), lambda i: (0, 0)),
                pl.BlockSpec((h0, h1), lambda i: (0, 0)),
                pl.BlockSpec((1, h1), lambda i: (0, 0)),
                pl.BlockSpec((h1, d_out_p), lambda i: (0, 0)),
                pl.BlockSpec((1, d_out_p), lambda i: (0, 0)),
            ],
            out_specs=pl.BlockSpec((bt, d_out_p), lambda i: (i, 0)),
        ),
        compiler_params=pltpu.CompilerParams(
            dimension_semantics=("parallel",),
            vmem_limit_bytes=48 * 1024 * 1024,
        ),
        cost_estimate=pl.CostEstimate(
            flops=flops, transcendentals=0, bytes_accessed=bytes_accessed),
    )(x, w1, b1, w2, b2, w3, b3)

    # drop the 10 -> 128 output-lane padding; return f32 like the PyTorch module
    return out[:, :d_out].astype(jnp.float32)


def init_params(key, d_in=28 * 28, h0=256, h1=128, d_out=10):
    """Deterministic parameter init (PyTorch-style uniform fan-in scaling)."""
    ks = jax.random.split(key, 6)

    def linear(kw, kb, fan_in, fan_out):
        bound = 1.0 / jnp.sqrt(fan_in)
        # stored as (in, out) == W.T relative to nn.Linear's (out, in)
        w = jax.random.uniform(kw, (fan_in, fan_out), jnp.float32, -bound, bound)
        b = jax.random.uniform(kb, (1, fan_out), jnp.float32, -bound, bound)
        return w, b

    w1, b1 = linear(ks[0], ks[1], d_in, h0)
    w2, b2 = linear(ks[2], ks[3], h0, h1)
    w3, b3 = linear(ks[4], ks[5], h1, d_out)
    return {"w1": w1, "b1": b1, "w2": w2, "b2": b2, "w3": w3, "b3": b3}


def reference_forward(x, params):
    h1 = jnp.maximum(x @ params["w1"] + params["b1"], 0.0)
    h2 = jnp.maximum(h1 @ params["w2"] + params["b2"], 0.0)
    return h2 @ params["w3"] + params["b3"]


if __name__ == "__main__":
    key = jax.random.PRNGKey(0)
    k_x, k_p = jax.random.split(key)

    # small shapes consistent with the module: input=784 (28*28), smaller hiddens
    B, D_IN, H0, H1, D_OUT = 128, 28 * 28, 256, 128, 10
    x = jax.random.normal(k_x, (B, D_IN), dtype=jnp.float32)
    params = init_params(k_p, d_in=D_IN, h0=H0, h1=H1, d_out=D_OUT)
    ref = reference_forward(x, params)

    # f32 path: exact-ish match against the reference
    kp_f32 = prepare_params(params, use_bf16=False)
    out_f32 = jax.block_until_ready(
        base_neural_net_forward(x, kp_f32, d_out=D_OUT))
    assert out_f32.shape == (B, D_OUT)
    assert jnp.allclose(out_f32, ref, atol=1e-4, rtol=1e-4), "f32 mismatch"

    # bf16-operand / f32-accumulation path (perf mode on v6e/v7x): relaxed tol
    kp_bf16 = prepare_params(params, use_bf16=True)
    out_bf16 = jax.block_until_ready(
        base_neural_net_forward(x, kp_bf16, d_out=D_OUT))
    assert out_bf16.shape == (B, D_OUT)
    assert jnp.allclose(out_bf16, ref, atol=5e-2, rtol=5e-2), "bf16 mismatch"

    print("KERNEL_OK")
</pallas_src>

<mosaic_0001>
module attributes {stable_mosaic.version = 11 : i64} {
  func.func @_mlp_kernel(%arg0: i32, %arg1: memref<128x784xf32, #tpu.memory_space<vmem>>, %arg2: memref<784x256xf32, #tpu.memory_space<vmem>>, %arg3: memref<1x256xf32, #tpu.memory_space<vmem>>, %arg4: memref<256x128xf32, #tpu.memory_space<vmem>>, %arg5: memref<1x128xf32, #tpu.memory_space<vmem>>, %arg6: memref<128x128xf32, #tpu.memory_space<vmem>>, %arg7: memref<1x128xf32, #tpu.memory_space<vmem>>, %arg8: memref<128x128xf32, #tpu.memory_space<vmem>>) attributes {dimension_semantics = [#tpu.dimension_semantics<parallel>], iteration_bounds = array<i64: 1>, scalar_prefetch = 0 : i64, scratch_operands = 0 : i64, tpu.core_type = #tpu.core_type<tc>, window_params = [{transform_indices = @transform_0, window_bounds = array<i64: 128, 784>}, {pipeline_mode = #tpu.pipeline_mode<synchronous>, transform_indices = @transform_1, window_bounds = array<i64: 784, 256>}, {pipeline_mode = #tpu.pipeline_mode<synchronous>, transform_indices = @transform_2, window_bounds = array<i64: 1, 256>}, {pipeline_mode = #tpu.pipeline_mode<synchronous>, transform_indices = @transform_3, window_bounds = array<i64: 256, 128>}, {pipeline_mode = #tpu.pipeline_mode<synchronous>, transform_indices = @transform_4, window_bounds = array<i64: 1, 128>}, {pipeline_mode = #tpu.pipeline_mode<synchronous>, transform_indices = @transform_5, window_bounds = array<i64: 128, 128>}, {pipeline_mode = #tpu.pipeline_mode<synchronous>, transform_indices = @transform_6, window_bounds = array<i64: 1, 128>}, {transform_indices = @transform_7, window_bounds = array<i64: 128, 128>}]} {
    %c0 = arith.constant 0 : index
    %c0_0 = arith.constant 0 : index
    %0 = vector.load %arg1[%c0, %c0_0] : memref<128x784xf32, #tpu.memory_space<vmem>>, vector<128x784xf32>
    %c0_1 = arith.constant 0 : index
    %c0_2 = arith.constant 0 : index
    %1 = vector.load %arg2[%c0_1, %c0_2] : memref<784x256xf32, #tpu.memory_space<vmem>>, vector<784x256xf32>
    %cst = arith.constant dense<0.000000e+00> : vector<128x256xf32>
    %2 = tpu.matmul %0, %1, %cst {dimension_numbers = #tpu.dot_dimension_numbers<[1], [0], [0], [1], [0, 0, 1, 1], [], []>} : vector<128x784xf32>, vector<784x256xf32>, vector<128x256xf32> -> vector<128x256xf32>
    %c0_3 = arith.constant 0 : index
    %c0_4 = arith.constant 0 : index
    %3 = vector.load %arg3[%c0_3, %c0_4] : memref<1x256xf32, #tpu.memory_space<vmem>>, vector<1x256xf32>
    %4 = vector.broadcast %3 : vector<1x256xf32> to vector<128x256xf32>
    %5 = arith.addf %2, %4 : vector<128x256xf32>
    %cst_5 = arith.constant 0.000000e+00 : f32
    %6 = vector.broadcast %cst_5 : f32 to vector<128x256xf32>
    %7 = arith.maximumf %5, %6 : vector<128x256xf32>
    %c0_6 = arith.constant 0 : index
    %c0_7 = arith.constant 0 : index
    %8 = vector.load %arg4[%c0_6, %c0_7] : memref<256x128xf32, #tpu.memory_space<vmem>>, vector<256x128xf32>
    %cst_8 = arith.constant dense<0.000000e+00> : vector<128x128xf32>
    %9 = tpu.matmul %7, %8, %cst_8 {dimension_numbers = #tpu.dot_dimension_numbers<[1], [0], [0], [1], [0, 0, 1, 1], [], []>} : vector<128x256xf32>, vector<256x128xf32>, vector<128x128xf32> -> vector<128x128xf32>
    %c0_9 = arith.constant 0 : index
    %c0_10 = arith.constant 0 : index
    %10 = vector.load %arg5[%c0_9, %c0_10] : memref<1x128xf32, #tpu.memory_space<vmem>>, vector<1x128xf32>
    %11 = vector.broadcast %10 : vector<1x128xf32> to vector<128x128xf32>
    %12 = arith.addf %9, %11 : vector<128x128xf32>
    %cst_11 = arith.constant 0.000000e+00 : f32
    %13 = vector.broadcast %cst_11 : f32 to vector<128x128xf32>
    %14 = arith.maximumf %12, %13 : vector<128x128xf32>
    %c0_12 = arith.constant 0 : index
    %c0_13 = arith.constant 0 : index
    %15 = vector.load %arg6[%c0_12, %c0_13] : memref<128x128xf32, #tpu.memory_space<vmem>>, vector<128x128xf32>
    %cst_14 = arith.constant dense<0.000000e+00> : vector<128x128xf32>
    %16 = tpu.matmul %14, %15, %cst_14 {dimension_numbers = #tpu.dot_dimension_numbers<[1], [0], [0], [1], [0, 0, 1, 1], [], []>} : vector<128x128xf32>, vector<128x128xf32>, vector<128x128xf32> -> vector<128x128xf32>
    %c0_15 = arith.constant 0 : index
    %c0_16 = arith.constant 0 : index
    %17 = vector.load %arg7[%c0_15, %c0_16] : memref<1x128xf32, #tpu.memory_space<vmem>>, vector<1x128xf32>
    %18 = vector.broadcast %17 : vector<1x128xf32> to vector<128x128xf32>
    %19 = arith.addf %16, %18 : vector<128x128xf32>
    %c0_17 = arith.constant 0 : index
    %c0_18 = arith.constant 0 : index
    %20 = vector.load %arg8[%c0_17, %c0_18] : memref<128x128xf32, #tpu.memory_space<vmem>>, vector<128x128xf32>
    tpu.vector_store %arg8[%c0_17, %c0_18], %19 {strides = array<i32>} : memref<128x128xf32, #tpu.memory_space<vmem>>, vector<128x128xf32>,
    return
  }
  func.func @transform_0(%arg0: i32) -> (i32, i32) {
    %c0_i32 = arith.constant 0 : i32
    %c0_i32_0 = arith.constant 0 : i32
    return %arg0, %c0_i32 : i32, i32
  }
  func.func @transform_1(%arg0: i32) -> (i32, i32) {
    %c0_i32 = arith.constant 0 : i32
    %c0_i32_0 = arith.constant 0 : i32
    %c0_i32_1 = arith.constant 0 : i32
    return %c0_i32, %c0_i32_0 : i32, i32
  }
  func.func @transform_2(%arg0: i32) -> (i32, i32) {
    %c0_i32 = arith.constant 0 : i32
    %c0_i32_0 = arith.constant 0 : i32
    %c0_i32_1 = arith.constant 0 : i32
    return %c0_i32, %c0_i32_0 : i32, i32
  }
  func.func @transform_3(%arg0: i32) -> (i32, i32) {
    %c0_i32 = arith.constant 0 : i32
    %c0_i32_0 = arith.constant 0 : i32
    %c0_i32_1 = arith.constant 0 : i32
    return %c0_i32, %c0_i32_0 : i32, i32
  }
  func.func @transform_4(%arg0: i32) -> (i32, i32) {
    %c0_i32 = arith.constant 0 : i32
    %c0_i32_0 = arith.constant 0 : i32
    %c0_i32_1 = arith.constant 0 : i32
    return %c0_i32, %c0_i32_0 : i32, i32
  }
  func.func @transform_5(%arg0: i32) -> (i32, i32) {
    %c0_i32 = arith.constant 0 : i32
    %c0_i32_0 = arith.constant 0 : i32
    %c0_i32_1 = arith.constant 0 : i32
    return %c0_i32, %c0_i32_0 : i32, i32
  }
  func.func @transform_6(%arg0: i32) -> (i32, i32) {
    %c0_i32 = arith.constant 0 : i32
    %c0_i32_0 = arith.constant 0 : i32
    %c0_i32_1 = arith.constant 0 : i32
    return %c0_i32, %c0_i32_0 : i32, i32
  }
  func.func @transform_7(%arg0: i32) -> (i32, i32) {
    %c0_i32 = arith.constant 0 : i32
    %c0_i32_0 = arith.constant 0 : i32
    return %arg0, %c0_i32 : i32, i32
  }
}

</mosaic_0001>

<llo_original>
// kernel: base_neural_net_forward.1
$region0: #{base_neural_net_forward.1}
  #allocation0 [shape = 'u32[]', space=smem, size = 0x4, offset = 0x4, fixed_abs, tag = 'smem constant byte address 0x4 - core index']
  #allocation1 [shape = 'u32[144,128]{1,0:T(1,128)}', space=vmem, size = 0x12000, scoped, tag = 'internal scratch']
  %s0 = inlined_call_operand.vmem [shape: f32[128,784], index: 0, kind: input, shape index: {}]
  %s1 = inlined_call_operand.vmem [shape: f32[784,256], index: 1, kind: input, shape index: {}]
  %s2 = inlined_call_operand.vmem [shape: f32[1,256], index: 2, kind: input, shape index: {}]
  %s3 = inlined_call_operand.hbm [shape: f32[256,128], index: 3, kind: input, shape index: {}]
  %s4 = inlined_call_operand.hbm [shape: f32[1,128], index: 4, kind: input, shape index: {}]
  %s5 = inlined_call_operand.vmem [shape: f32[128,128], index: 5, kind: input, shape index: {}]
  %s6 = inlined_call_operand.hbm [shape: f32[1,128], index: 6, kind: input, shape index: {}]
  %s7 = inlined_call_operand.vmem [shape: f32[128,128], index: 7, kind: output, shape index: {}]
  %s8 = sld [smem:[#allocation0]]
  $region50: #{base_neural_net_forward.1} parent=0
    _
  %s10 = ssub.s32 1, %s8
  %s11 = scalar_select 0, %s10, %s8
  $region1: #{base_neural_net_forward.1} parent=0
    #allocation2 [shape = 'u8[131072]{0}', space=vmem, size = 0x20000, scoped, tag = 'input window, operand 3, single buffered']
    #allocation3 [shape = 's32[1]{0}', space=sflag, size = 0x4, scoped, tag = 'scoped memory for base_neural_net_forward.1']
    #allocation4 [shape = 'u8[512]{0}', space=vmem, size = 0x400, scoped, tag = 'input window, operand 4, single buffered']
    #allocation5 [shape = 's32[1]{0}', space=sflag, size = 0x4, scoped, tag = 'scoped memory for base_neural_net_forward.1']
    #allocation6 [shape = 'u8[512]{0}', space=vmem, size = 0x400, scoped, tag = 'input window, operand 6, single buffered']
    %12 = vsyncpa [#allocation3], 0
    %13 = vsyncpa [#allocation5], 0
    // Predicated region
    $region2: #{base_neural_net_forward.1} parent=1 // pred_check
      _
    $region3: #{base_neural_net_forward.1} parent=1 // pred_check_branch
      %15 = sbr.rel (0) target = $region5
    $region4: #{base_neural_net_forward.1} parent=1 // pred_region
      _
    $region5: #{base_neural_net_forward.1} parent=1 // pred_fallthru
      _
    // Predicated region
    $region6: #{base_neural_net_forward.1} parent=1 // pred_check
      _
    $region7: #{base_neural_net_forward.1} parent=1 // pred_check_branch
      %17 = sbr.rel (0) target = $region9
    $region8: #{base_neural_net_forward.1} parent=1 // pred_region
      _
    $region9: #{base_neural_net_forward.1} parent=1 // pred_fallthru
      _
    // Predicated region
    $region10: #{base_neural_net_forward.1} parent=1 // pred_check
      _
    $region11: #{base_neural_net_forward.1} parent=1 // pred_check_branch
      %19 = sbr.rel (0) target = $region13
    $region12: #{base_neural_net_forward.1} parent=1 // pred_region
      _
    $region13: #{base_neural_net_forward.1} parent=1 // pred_fallthru
      _
    // Predicated region
    $region14: #{base_neural_net_forward.1} parent=1 // pred_check
      _
    $region15: #{base_neural_net_forward.1} parent=1 // pred_check_branch
      %21 = sbr.rel (0) target = $region17
    $region16: #{base_neural_net_forward.1} parent=1 // pred_region
      %s23 = ssub.s32 4096, 4096
      %24 = vsyncadd [#allocation3], %s23
      %s25 = sshll.u32 [#allocation2], 4
      %s26 = int_to_ptr.vmem [resolvable:$true] %s25
      %31 = dma.hbm_to_vmem [thread:$0]  %s3, 4096, %s26, [#allocation3], 128, 128, 8
    $region17: #{base_neural_net_forward.1} parent=1 // pred_fallthru
      _
    // Predicated region
    $region18: #{base_neural_net_forward.1} parent=1 // pred_check
      _
    $region19: #{base_neural_net_forward.1} parent=1 // pred_check_branch
      %33 = sbr.rel (0) target = $region21
    $region20: #{base_neural_net_forward.1} parent=1 // pred_region
      %s35 = ssub.s32 16, 16
      %36 = vsyncadd [#allocation5], %s35
      %s38 = sshll.u32 [#allocation4], 4
      %s39 = int_to_ptr.vmem [resolvable:$true] %s38
      %41 = dma.hbm_to_vmem [thread:$0]  %s4, 16, %s39, [#allocation5]
    $region21: #{base_neural_net_forward.1} parent=1 // pred_fallthru
      _
    // Predicated region
    $region22: #{base_neural_net_forward.1} parent=1 // pred_check
      _
    $region23: #{base_neural_net_forward.1} parent=1 // pred_check_branch
      %43 = sbr.rel (0) target = $region25
    $region24: #{base_neural_net_forward.1} parent=1 // pred_region
      _
    $region25: #{base_neural_net_forward.1} parent=1 // pred_fallthru
      _
    // Predicated region
    $region26: #{base_neural_net_forward.1} parent=1 // pred_check
      _
    $region27: #{base_neural_net_forward.1} parent=1 // pred_check_branch
      %45 = sbr.rel (0) target = $region29
    $region28: #{base_neural_net_forward.1} parent=1 // pred_region
      %s47 = ssub.s32 16, 16
      %48 = vsyncadd [#allocation5], %s47
      %s50 = sshll.u32 [#allocation6], 4
      %s51 = int_to_ptr.vmem [resolvable:$true] %s50
      %53 = dma.hbm_to_vmem [thread:$0]  %s6, 16, %s51, [#allocation5]
    $region29: #{base_neural_net_forward.1} parent=1 // pred_fallthru
      _
    // Predicated region
    $region30: #{base_neural_net_forward.1} parent=1 // pred_check
      _
    $region31: #{base_neural_net_forward.1} parent=1 // pred_check_branch
      %55 = sbr.rel (0) target = $region33
    $region32: #{base_neural_net_forward.1} parent=1 // pred_region
      %56 = dma.done [#allocation3], 4096
    $region33: #{base_neural_net_forward.1} parent=1 // pred_fallthru
      _
    // Predicated region
    $region34: #{base_neural_net_forward.1} parent=1 // pred_check
      _
    $region35: #{base_neural_net_forward.1} parent=1 // pred_check_branch
      %58 = sbr.rel (0) target = $region37
    $region36: #{base_neural_net_forward.1} parent=1 // pred_region
      %59 = dma.done [#allocation5], 16
    $region37: #{base_neural_net_forward.1} parent=1 // pred_fallthru
      _
    // Predicated region
    $region38: #{base_neural_net_forward.1} parent=1 // pred_check
      _
    $region39: #{base_neural_net_forward.1} parent=1 // pred_check_branch
      %61 = sbr.rel (0) target = $region41
    $region40: #{base_neural_net_forward.1} parent=1 // pred_region
      %62 = dma.done [#allocation5], 16
    $region41: #{base_neural_net_forward.1} parent=1 // pred_fallthru
      _
    %v63 = vld [vmem:[%s0] sm:$0xff]
    %v64 = vld [vmem:[%s0 + $0x8] sm:$0xff]
    %v65 = vld [vmem:[%s0 + $0x10] sm:$0xff]
    %v66 = vld [vmem:[%s0 + $0x18] sm:$0xff]
    %v67 = vld [vmem:[%s0 + $0x20] sm:$0xff]
    %v68 = vld [vmem:[%s0 + $0x28] sm:$0xff]
    %v69 = vld [vmem:[%s0 + $0x30] sm:$0xff]
    %v70 = vld [vmem:[%s0 + $0x38] sm:$0xff]
    %v71 = vld [vmem:[%s0 + $0x40] sm:$0xff]
    %v72 = vld [vmem:[%s0 + $0x48] sm:$0xff]
    %v73 = vld [vmem:[%s0 + $0x50] sm:$0xff]
    %v74 = vld [vmem:[%s0 + $0x58] sm:$0xff]
    %v75 = vld [vmem:[%s0 + $0x60] sm:$0xff]
    %v76 = vld [vmem:[%s0 + $0x68] sm:$0xff]
    %v77 = vld [vmem:[%s0 + $0x70] sm:$0xff]
    %v78 = vld [vmem:[%s0 + $0x78] sm:$0xff]
    %v79 = vld [vmem:[%s0 + $0x80] sm:$0xff]
    %v80 = vld [vmem:[%s0 + $0x88] sm:$0xff]
    %v81 = vld [vmem:[%s0 + $0x90] sm:$0xff]
    %v82 = vld [vmem:[%s0 + $0x98] sm:$0xff]
    %v83 = vld [vmem:[%s0 + $0xa0] sm:$0xff]
    %v84 = vld [vmem:[%s0 + $0xa8] sm:$0xff]
    %v85 = vld [vmem:[%s0 + $0xb0] sm:$0xff]
    %v86 = vld [vmem:[%s0 + $0xb8] sm:$0xff]
    %v87 = vld [vmem:[%s0 + $0xc0] sm:$0xff]
    %v88 = vld [vmem:[%s0 + $0xc8] sm:$0xff]
    %v89 = vld [vmem:[%s0 + $0xd0] sm:$0xff]
    %v90 = vld [vmem:[%s0 + $0xd8] sm:$0xff]
    %v91 = vld [vmem:[%s0 + $0xe0] sm:$0xff]
    %v92 = vld [vmem:[%s0 + $0xe8] sm:$0xff]
    %v93 = vld [vmem:[%s0 + $0xf0] sm:$0xff]
    %v94 = vld [vmem:[%s0 + $0xf8] sm:$0xff]
    %v95 = vld [vmem:[%s0 + $0x100] sm:$0xff]
    %v96 = vld [vmem:[%s0 + $0x108] sm:$0xff]
    %v97 = vld [vmem:[%s0 + $0x110] sm:$0xff]
    %v98 = vld [vmem:[%s0 + $0x118] sm:$0xff]
    %v99 = vld [vmem:[%s0 + $0x120] sm:$0xff]
    %v100 = vld [vmem:[%s0 + $0x128] sm:$0xff]
    %v101 = vld [vmem:[%s0 + $0x130] sm:$0xff]
    %v102 = vld [vmem:[%s0 + $0x138] sm:$0xff]
    %v103 = vld [vmem:[%s0 + $0x140] sm:$0xff]
    %v104 = vld [vmem:[%s0 + $0x148] sm:$0xff]
    %v105 = vld [vmem:[%s0 + $0x150] sm:$0xff]
    %v106 = vld [vmem:[%s0 + $0x158] sm:$0xff]
    %v107 = vld [vmem:[%s0 + $0x160] sm:$0xff]
    %v108 = vld [vmem:[%s0 + $0x168] sm:$0xff]
    %v109 = vld [vmem:[%s0 + $0x170] sm:$0xff]
    %v110 = vld [vmem:[%s0 + $0x178] sm:$0xff]
    %v111 = vld [vmem:[%s0 + $0x180] sm:$0xff]
    %v112 = vld [vmem:[%s0 + $0x188] sm:$0xff]
    %v113 = vld [vmem:[%s0 + $0x190] sm:$0xff]
    %v114 = vld [vmem:[%s0 + $0x198] sm:$0xff]
    %v115 = vld [vmem:[%s0 + $0x1a0] sm:$0xff]
    %v116 = vld [vmem:[%s0 + $0x1a8] sm:$0xff]
    %v117 = vld [vmem:[%s0 + $0x1b0] sm:$0xff]
    %v118 = vld [vmem:[%s0 + $0x1b8] sm:$0xff]
    %v119 = vld [vmem:[%s0 + $0x1c0] sm:$0xff]
    %v120 = vld [vmem:[%s0 + $0x1c8] sm:$0xff]
    %v121 = vld [vmem:[%s0 + $0x1d0] sm:$0xff]
    %v122 = vld [vmem:[%s0 + $0x1d8] sm:$0xff]
    %v123 = vld [vmem:[%s0 + $0x1e0] sm:$0xff]
    %v124 = vld [vmem:[%s0 + $0x1e8] sm:$0xff]
    %v125 = vld [vmem:[%s0 + $0x1f0] sm:$0xff]
    %v126 = vld [vmem:[%s0 + $0x1f8] sm:$0xff]
    %v127 = vld [vmem:[%s0 + $0x200] sm:$0xff]
    %v128 = vld [vmem:[%s0 + $0x208] sm:$0xff]
    %v129 = vld [vmem:[%s0 + $0x210] sm:$0xff]
    %v130 = vld [vmem:[%s0 + $0x218] sm:$0xff]
    %v131 = vld [vmem:[%s0 + $0x220] sm:$0xff]
    %v132 = vld [vmem:[%s0 + $0x228] sm:$0xff]
    %v133 = vld [vmem:[%s0 + $0x230] sm:$0xff]
    %v134 = vld [vmem:[%s0 + $0x238] sm:$0xff]
    %v135 = vld [vmem:[%s0 + $0x240] sm:$0xff]
    %v136 = vld [vmem:[%s0 + $0x248] sm:$0xff]
    %v137 = vld [vmem:[%s0 + $0x250] sm:$0xff]
    %v138 = vld [vmem:[%s0 + $0x258] sm:$0xff]
    %v139 = vld [vmem:[%s0 + $0x260] sm:$0xff]
    %v140 = vld [vmem:[%s0 + $0x268] sm:$0xff]
    %v141 = vld [vmem:[%s0 + $0x270] sm:$0xff]
    %v142 = vld [vmem:[%s0 + $0x278] sm:$0xff]
    %v143 = vld [vmem:[%s0 + $0x280] sm:$0xff]
    %v144 = vld [vmem:[%s0 + $0x288] sm:$0xff]
    %v145 = vld [vmem:[%s0 + $0x290] sm:$0xff]
    %v146 = vld [vmem:[%s0 + $0x298] sm:$0xff]
    %v147 = vld [vmem:[%s0 + $0x2a0] sm:$0xff]
    %v148 = vld [vmem:[%s0 + $0x2a8] sm:$0xff]
    %v149 = vld [vmem:[%s0 + $0x2b0] sm:$0xff]
    %v150 = vld [vmem:[%s0 + $0x2b8] sm:$0xff]
    %v151 = vld [vmem:[%s0 + $0x2c0] sm:$0xff]
    %v152 = vld [vmem:[%s0 + $0x2c8] sm:$0xff]
    %v153 = vld [vmem:[%s0 + $0x2d0] sm:$0xff]
    %v154 = vld [vmem:[%s0 + $0x2d8] sm:$0xff]
    %v155 = vld [vmem:[%s0 + $0x2e0] sm:$0xff]
    %v156 = vld [vmem:[%s0 + $0x2e8] sm:$0xff]
    %v157 = vld [vmem:[%s0 + $0x2f0] sm:$0xff]
    %v158 = vld [vmem:[%s0 + $0x2f8] sm:$0xff]
    %v159 = vld [vmem:[%s0 + $0x300] sm:$0xff]
    %v160 = vld [vmem:[%s0 + $0x308] sm:$0xff]
    %v161 = vld [vmem:[%s0 + $0x310] sm:$0xff]
    %v162 = vld [vmem:[%s0 + $0x318] sm:$0xff]
    %v163 = vld [vmem:[%s0 + $0x320] sm:$0xff]
    %v164 = vld [vmem:[%s0 + $0x328] sm:$0xff]
    %v165 = vld [vmem:[%s0 + $0x330] sm:$0xff]
    %v166 = vld [vmem:[%s0 + $0x338] sm:$0xff]
    %v167 = vld [vmem:[%s0 + $0x340] sm:$0xff]
    %v168 = vld [vmem:[%s0 + $0x348] sm:$0xff]
    %v169 = vld [vmem:[%s0 + $0x350] sm:$0xff]
    %v170 = vld [vmem:[%s0 + $0x358] sm:$0xff]
    %v171 = vld [vmem:[%s0 + $0x360] sm:$0xff]
    %v172 = vld [vmem:[%s0 + $0x368] sm:$0xff]
    %v173 = vld [vmem:[%s0 + $0x370] sm:$0xff]
    %v174 = vld [vmem:[%s0 + $0x378] sm:$0xff]
    %v175 = vld [vmem:[%s1] sm:$0xff]
    %v176 = vld [vmem:[%s1 + $0x8] sm:$0xff]
    %v177 = vld [vmem:[%s1 + $0x10] sm:$0xff]
    %v178 = vld [vmem:[%s1 + $0x18] sm:$0xff]
    %v179 = vld [vmem:[%s1 + $0x20] sm:$0xff]
    %v180 = vld [vmem:[%s1 + $0x28] sm:$0xff]
    %v181 = vld [vmem:[%s1 + $0x30] sm:$0xff]
    %v182 = vld [vmem:[%s1 + $0x38] sm:$0xff]
    %v183 = vld [vmem:[%s1 + $0x40] sm:$0xff]
    %v184 = vld [vmem:[%s1 + $0x48] sm:$0xff]
    %v185 = vld [vmem:[%s1 + $0x50] sm:$0xff]
    %v186 = vld [vmem:[%s1 + $0x58] sm:$0xff]
    %v187 = vld [vmem:[%s1 + $0x60] sm:$0xff]
    %v188 = vld [vmem:[%s1 + $0x68] sm:$0xff]
    %v189 = vld [vmem:[%s1 + $0x70] sm:$0xff]
    %v190 = vld [vmem:[%s1 + $0x78] sm:$0xff]
    %v191 = vld [vmem:[%s1 + $0x80] sm:$0xff]
    %v192 = vld [vmem:[%s1 + $0x88] sm:$0xff]
    %v193 = vld [vmem:[%s1 + $0x90] sm:$0xff]
    %v194 = vld [vmem:[%s1 + $0x98] sm:$0xff]
    %v195 = vld [vmem:[%s1 + $0xa0] sm:$0xff]
    %v196 = vld [vmem:[%s1 + $0xa8] sm:$0xff]
    %v197 = vld [vmem:[%s1 + $0xb0] sm:$0xff]
    %v198 = vld [vmem:[%s1 + $0xb8] sm:$0xff]
    %v199 = vld [vmem:[%s1 + $0xc0] sm:$0xff]
    %v200 = vld [vmem:[%s1 + $0xc8] sm:$0xff]
    %v201 = vld [vmem:[%s1 + $0xd0] sm:$0xff]
    %v202 = vld [vmem:[%s1 + $0xd8] sm:$0xff]
    %v203 = vld [vmem:[%s1 + $0xe0] sm:$0xff]
    %v204 = vld [vmem:[%s1 + $0xe8] sm:$0xff]
    %v205 = vld [vmem:[%s1 + $0xf0] sm:$0xff]
    %v206 = vld [vmem:[%s1 + $0xf8] sm:$0xff]
    %v207 = vld [vmem:[%s1 + $0x100] sm:$0xff]
    %v208 = vld [vmem:[%s1 + $0x108] sm:$0xff]
    %v209 = vld [vmem:[%s1 + $0x110] sm:$0xff]
    %v210 = vld [vmem:[%s1 + $0x118] sm:$0xff]
    %v211 = vld [vmem:[%s1 + $0x120] sm:$0xff]
    %v212 = vld [vmem:[%s1 + $0x128] sm:$0xff]
    %v213 = vld [vmem:[%s1 + $0x130] sm:$0xff]
    %v214 = vld [vmem:[%s1 + $0x138] sm:$0xff]
    %v215 = vld [vmem:[%s1 + $0x140] sm:$0xff]
    %v216 = vld [vmem:[%s1 + $0x148] sm:$0xff]
    %v217 = vld [vmem:[%s1 + $0x150] sm:$0xff]
    %v218 = vld [vmem:[%s1 + $0x158] sm:$0xff]
    %v219 = vld [vmem:[%s1 + $0x160] sm:$0xff]
    %v220 = vld [vmem:[%s1 + $0x168] sm:$0xff]
    %v221 = vld [vmem:[%s1 + $0x170] sm:$0xff]
    %v222 = vld [vmem:[%s1 + $0x178] sm:$0xff]
    %v223 = vld [vmem:[%s1 + $0x180] sm:$0xff]
    %v224 = vld [vmem:[%s1 + $0x188] sm:$0xff]
    %v225 = vld [vmem:[%s1 + $0x190] sm:$0xff]
    %v226 = vld [vmem:[%s1 + $0x198] sm:$0xff]
    %v227 = vld [vmem:[%s1 + $0x1a0] sm:$0xff]
    %v228 = vld [vmem:[%s1 + $0x1a8] sm:$0xff]
    %v229 = vld [vmem:[%s1 + $0x1b0] sm:$0xff]
    %v230 = vld [vmem:[%s1 + $0x1b8] sm:$0xff]
    %v231 = vld [vmem:[%s1 + $0x1c0] sm:$0xff]
    %v232 = vld [vmem:[%s1 + $0x1c8] sm:$0xff]
    %v233 = vld [vmem:[%s1 + $0x1d0] sm:$0xff]
    %v234 = vld [vmem:[%s1 + $0x1d8] sm:$0xff]
    %v235 = vld [vmem:[%s1 + $0x1e0] sm:$0xff]
    %v236 = vld [vmem:[%s1 + $0x1e8] sm:$0xff]
    %v237 = vld [vmem:[%s1 + $0x1f0] sm:$0xff]
    %v238 = vld [vmem:[%s1 + $0x1f8] sm:$0xff]
    %v239 = vld [vmem:[%s1 + $0x200] sm:$0xff]
    %v240 = vld [vmem:[%s1 + $0x208] sm:$0xff]
    %v241 = vld [vmem:[%s1 + $0x210] sm:$0xff]
    %v242 = vld [vmem:[%s1 + $0x218] sm:$0xff]
    %v243 = vld [vmem:[%s1 + $0x220] sm:$0xff]
    %v244 = vld [vmem:[%s1 + $0x228] sm:$0xff]
    %v245 = vld [vmem:[%s1 + $0x230] sm:$0xff]
    %v246 = vld [vmem:[%s1 + $0x238] sm:$0xff]
    %v247 = vld [vmem:[%s1 + $0x240] sm:$0xff]
    %v248 = vld [vmem:[%s1 + $0x248] sm:$0xff]
    %v249 = vld [vmem:[%s1 + $0x250] sm:$0xff]
    %v250 = vld [vmem:[%s1 + $0x258] sm:$0xff]
    %v251 = vld [vmem:[%s1 + $0x260] sm:$0xff]
    %v252 = vld [vmem:[%s1 + $0x268] sm:$0xff]
    %v253 = vld [vmem:[%s1 + $0x270] sm:$0xff]
    %v254 = vld [vmem:[%s1 + $0x278] sm:$0xff]
    %v255 = vld [vmem:[%s1 + $0x280] sm:$0xff]
    %v256 = vld [vmem:[%s1 + $0x288] sm:$0xff]
    %v257 = vld [vmem:[%s1 + $0x290] sm:$0xff]
    %v258 = vld [vmem:[%s1 + $0x298] sm:$0xff]
    %v259 = vld [vmem:[%s1 + $0x2a0] sm:$0xff]
    %v260 = vld [vmem:[%s1 + $0x2a8] sm:$0xff]
    %v261 = vld [vmem:[%s1 + $0x2b0] sm:$0xff]
    %v262 = vld [vmem:[%s1 + $0x2b8] sm:$0xff]
    %v263 = vld [vmem:[%s1 + $0x2c0] sm:$0xff]
    %v264 = vld [vmem:[%s1 + $0x2c8] sm:$0xff]
    %v265 = vld [vmem:[%s1 + $0x2d0] sm:$0xff]
    %v266 = vld [vmem:[%s1 + $0x2d8] sm:$0xff]
    %v267 = vld [vmem:[%s1 + $0x2e0] sm:$0xff]
    %v268 = vld [vmem:[%s1 + $0x2e8] sm:$0xff]
    %v269 = vld [vmem:[%s1 + $0x2f0] sm:$0xff]
    %v270 = vld [vmem:[%s1 + $0x2f8] sm:$0xff]
    %v271 = vld [vmem:[%s1 + $0x300] sm:$0xff]
    %v272 = vld [vmem:[%s1 + $0x308] sm:$0xff]
    %v273 = vld [vmem:[%s1 + $0x310] sm:$0xff]
    %v274 = vld [vmem:[%s1 + $0x318] sm:$0xff]
    %v275 = vld [vmem:[%s1 + $0x320] sm:$0xff]
    %v276 = vld [vmem:[%s1 + $0x328] sm:$0xff]
    %v277 = vld [vmem:[%s1 + $0x330] sm:$0xff]
    %v278 = vld [vmem:[%s1 + $0x338] sm:$0xff]
    %v279 = vld [vmem:[%s1 + $0x340] sm:$0xff]
    %v280 = vld [vmem:[%s1 + $0x348] sm:$0xff]
    %v281 = vld [vmem:[%s1 + $0x350] sm:$0xff]
    %v282 = vld [vmem:[%s1 + $0x358] sm:$0xff]
    %v283 = vld [vmem:[%s1 + $0x360] sm:$0xff]
    %v284 = vld [vmem:[%s1 + $0x368] sm:$0xff]
    %v285 = vld [vmem:[%s1 + $0x370] sm:$0xff]
    %v286 = vld [vmem:[%s1 + $0x378] sm:$0xff]
    %v287 = vld [vmem:[%s1 + $0x380] sm:$0xff]
    %v288 = vld [vmem:[%s1 + $0x388] sm:$0xff]
    %v289 = vld [vmem:[%s1 + $0x390] sm:$0xff]
    %v290 = vld [vmem:[%s1 + $0x398] sm:$0xff]
    %v291 = vld [vmem:[%s1 + $0x3a0] sm:$0xff]
    %v292 = vld [vmem:[%s1 + $0x3a8] sm:$0xff]
    %v293 = vld [vmem:[%s1 + $0x3b0] sm:$0xff]
    %v294 = vld [vmem:[%s1 + $0x3b8] sm:$0xff]
    %v295 = vld [vmem:[%s1 + $0x3c0] sm:$0xff]
    %v296 = vld [vmem:[%s1 + $0x3c8] sm:$0xff]
    %v297 = vld [vmem:[%s1 + $0x3d0] sm:$0xff]
    %v298 = vld [vmem:[%s1 + $0x3d8] sm:$0xff]
    %v299 = vld [vmem:[%s1 + $0x3e0] sm:$0xff]
    %v300 = vld [vmem:[%s1 + $0x3e8] sm:$0xff]
    %v301 = vld [vmem:[%s1 + $0x3f0] sm:$0xff]
    %v302 = vld [vmem:[%s1 + $0x3f8] sm:$0xff]
    %v303 = vld [vmem:[%s1 + $0x400] sm:$0xff]
    %v304 = vld [vmem:[%s1 + $0x408] sm:$0xff]
    %v305 = vld [vmem:[%s1 + $0x410] sm:$0xff]
    %v306 = vld [vmem:[%s1 + $0x418] sm:$0xff]
    %v307 = vld [vmem:[%s1 + $0x420] sm:$0xff]
    %v308 = vld [vmem:[%s1 + $0x428] sm:$0xff]
    %v309 = vld [vmem:[%s1 + $0x430] sm:$0xff]
    %v310 = vld [vmem:[%s1 + $0x438] sm:$0xff]
    %v311 = vld [vmem:[%s1 + $0x440] sm:$0xff]
    %v312 = vld [vmem:[%s1 + $0x448] sm:$0xff]
    %v313 = vld [vmem:[%s1 + $0x450] sm:$0xff]
    %v314 = vld [vmem:[%s1 + $0x458] sm:$0xff]
    %v315 = vld [vmem:[%s1 + $0x460] sm:$0xff]
    %v316 = vld [vmem:[%s1 + $0x468] sm:$0xff]
    %v317 = vld [vmem:[%s1 + $0x470] sm:$0xff]
    %v318 = vld [vmem:[%s1 + $0x478] sm:$0xff]
    %v319 = vld [vmem:[%s1 + $0x480] sm:$0xff]
    %v320 = vld [vmem:[%s1 + $0x488] sm:$0xff]
    %v321 = vld [vmem:[%s1 + $0x490] sm:$0xff]
    %v322 = vld [vmem:[%s1 + $0x498] sm:$0xff]
    %v323 = vld [vmem:[%s1 + $0x4a0] sm:$0xff]
    %v324 = vld [vmem:[%s1 + $0x4a8] sm:$0xff]
    %v325 = vld [vmem:[%s1 + $0x4b0] sm:$0xff]
    %v326 = vld [vmem:[%s1 + $0x4b8] sm:$0xff]
    %v327 = vld [vmem:[%s1 + $0x4c0] sm:$0xff]
    %v328 = vld [vmem:[%s1 + $0x4c8] sm:$0xff]
    %v329 = vld [vmem:[%s1 + $0x4d0] sm:$0xff]
    %v330 = vld [vmem:[%s1 + $0x4d8] sm:$0xff]
    %v331 = vld [vmem:[%s1 + $0x4e0] sm:$0xff]
    %v332 = vld [vmem:[%s1 + $0x4e8] sm:$0xff]
    %v333 = vld [vmem:[%s1 + $0x4f0] sm:$0xff]
    %v334 = vld [vmem:[%s1 + $0x4f8] sm:$0xff]
    %v335 = vld [vmem:[%s1 + $0x500] sm:$0xff]
    %v336 = vld [vmem:[%s1 + $0x508] sm:$0xff]
    %v337 = vld [vmem:[%s1 + $0x510] sm:$0xff]
    %v338 = vld [vmem:[%s1 + $0x518] sm:$0xff]
    %v339 = vld [vmem:[%s1 + $0x520] sm:$0xff]
    %v340 = vld [vmem:[%s1 + $0x528] sm:$0xff]
    %v341 = vld [vmem:[%s1 + $0x530] sm:$0xff]
    %v342 = vld [vmem:[%s1 + $0x538] sm:$0xff]
    %v343 = vld [vmem:[%s1 + $0x540] sm:$0xff]
    %v344 = vld [vmem:[%s1 + $0x548] sm:$0xff]
    %v345 = vld [vmem:[%s1 + $0x550] sm:$0xff]
    %v346 = vld [vmem:[%s1 + $0x558] sm:$0xff]
    %v347 = vld [vmem:[%s1 + $0x560] sm:$0xff]
    %v348 = vld [vmem:[%s1 + $0x568] sm:$0xff]
    %v349 = vld [vmem:[%s1 + $0x570] sm:$0xff]
    %v350 = vld [vmem:[%s1 + $0x578] sm:$0xff]
    %v351 = vld [vmem:[%s1 + $0x580] sm:$0xff]
    %v352 = vld [vmem:[%s1 + $0x588] sm:$0xff]
    %v353 = vld [vmem:[%s1 + $0x590] sm:$0xff]
    %v354 = vld [vmem:[%s1 + $0x598] sm:$0xff]
    %v355 = vld [vmem:[%s1 + $0x5a0] sm:$0xff]
    %v356 = vld [vmem:[%s1 + $0x5a8] sm:$0xff]
    %v357 = vld [vmem:[%s1 + $0x5b0] sm:$0xff]
    %v358 = vld [vmem:[%s1 + $0x5b8] sm:$0xff]
    %v359 = vld [vmem:[%s1 + $0x5c0] sm:$0xff]
    %v360 = vld [vmem:[%s1 + $0x5c8] sm:$0xff]
    %v361 = vld [vmem:[%s1 + $0x5d0] sm:$0xff]
    %v362 = vld [vmem:[%s1 + $0x5d8] sm:$0xff]
    %v363 = vld [vmem:[%s1 + $0x5e0] sm:$0xff]
    %v364 = vld [vmem:[%s1 + $0x5e8] sm:$0xff]
    %v365 = vld [vmem:[%s1 + $0x5f0] sm:$0xff]
    %v366 = vld [vmem:[%s1 + $0x5f8] sm:$0xff]
    %v367 = vld [vmem:[%s1 + $0x600] sm:$0xff]
    %v368 = vld [vmem:[%s1 + $0x608] sm:$0xff]
    %v369 = vld [vmem:[%s1 + $0x610] sm:$0xff]
    %v370 = vld [vmem:[%s1 + $0x618] sm:$0xff]
    %v371 = vld [vmem:[%s2] sm:$0x3]
    %v373 = vlaneseq
    %v374 = vshrl.u32 %v373, 7
    %v375 = vsub.s32 0, %v374
    %v376 = vrot.slane %v371, %v375
    %v377 = vlaneseq
    %v378 = vshrl.u32 %v377, 7
    %v379 = vsub.s32 1, %v378
    %v380 = vrot.slane %v371, %v379
    %vm383 = vcmask 130048
    %v385 = vsel %vm383, %v69, 0
    %v388 = vsel %vm383, %v76, 0
    %v391 = vsel %vm383, %v83, 0
    %v394 = vsel %vm383, %v90, 0
    %v397 = vsel %vm383, %v97, 0
    %v400 = vsel %vm383, %v104, 0
    %v403 = vsel %vm383, %v111, 0
    %v406 = vsel %vm383, %v118, 0
    %v409 = vsel %vm383, %v125, 0
    %v412 = vsel %vm383, %v132, 0
    %v415 = vsel %vm383, %v139, 0
    %v418 = vsel %vm383, %v146, 0
    %v421 = vsel %vm383, %v153, 0
    %v424 = vsel %vm383, %v160, 0
    %v427 = vsel %vm383, %v167, 0
    %v430 = vsel %vm383, %v174, 0
    %432 = vmatprep.subr.mxu0 %v176
    %433 = vmatpush1.msra.mxu0 %v175
    %434 = vmatprep.subr.mxu0 %v178
    %435 = vmatpush1.msra.mxu0 %v177
    %436 = vmatprep.subr.mxu0 %v180
    %437 = vmatpush1.msra.mxu0 %v179
    %438 = vmatprep.subr.mxu0 %v182
    %439 = vmatpush1.msra.mxu0 %v181
    %440 = vmatprep.subr.mxu0 %v184
    %441 = vmatpush1.msra.mxu0 %v183
    %442 = vmatprep.subr.mxu0 %v186
    %443 = vmatpush1.msra.mxu0 %v185
    %444 = vmatprep.subr.mxu0 %v188
    %445 = vmatpush1.msra.mxu0 %v187
    %446 = vmatprep.subr.mxu0 %v190
    %447 = vmatpush1.msra.mxu0 %v189
    %448 = vmatprep.subr.mxu0 %v192
    %449 = vmatpush1.msra.mxu0 %v191
    %450 = vmatprep.subr.mxu0 %v194
    %451 = vmatpush1.msra.mxu0 %v193
    %452 = vmatprep.subr.mxu0 %v196
    %453 = vmatpush1.msra.mxu0 %v195
    %454 = vmatprep.subr.mxu0 %v198
    %455 = vmatpush1.msra.mxu0 %v197
    %456 = vmatprep.subr.mxu0 %v200
    %457 = vmatpush1.msra.mxu0 %v199
    %458 = vmatprep.subr.mxu0 %v202
    %459 = vmatpush1.msra.mxu0 %v201
    %460 = vmatprep.subr.mxu0 %v204
    %461 = vmatpush1.msra.mxu0 %v203
    %462 = vmatprep.subr.mxu0 %v206
    %463 = vmatpush1.msra.mxu0 %v205
    %464 = vmatprep.subr.mxu0 %v208
    %465 = vmatpush1.msra.mxu0 %v207
    %466 = vmatprep.subr.mxu0 %v210
    %467 = vmatpush1.msra.mxu0 %v209
    %468 = vmatprep.subr.mxu0 %v212
    %469 = vmatpush1.msra.mxu0 %v211
    %470 = vmatprep.subr.mxu0 %v214
    %471 = vmatpush1.msra.mxu0 %v213
    %472 = vmatprep.subr.mxu0 %v216
    %473 = vmatpush1.msra.mxu0 %v215
    %474 = vmatprep.subr.mxu0 %v218
    %475 = vmatpush1.msra.mxu0 %v217
    %476 = vmatprep.subr.mxu0 %v220
    %477 = vmatpush1.msra.mxu0 %v219
    %478 = vmatprep.subr.mxu0 %v222
    %479 = vmatpush1.msra.mxu0 %v221
    %480 = vmatprep.subr.mxu0 %v224
    %481 = vmatpush1.msra.mxu0 %v223
    %482 = vmatprep.subr.mxu0 %v226
    %483 = vmatpush1.msra.mxu0 %v225
    %484 = vmatprep.subr.mxu0 %v228
    %485 = vmatpush1.msra.mxu0 %v227
    %486 = vmatprep.subr.mxu0 %v230
    %487 = vmatpush1.msra.mxu0 %v229
    %488 = vmatprep.subr.mxu0 %v232
    %489 = vmatpush1.msra.mxu0 %v231
    %490 = vmatprep.subr.mxu0 %v234
    %491 = vmatpush1.msra.mxu0 %v233
    %492 = vmatprep.subr.mxu0 %v236
    %493 = vmatpush1.msra.mxu0 %v235
    %494 = vmatprep.subr.mxu0 %v238
    %495 = vmatpush1.msra.mxu0 %v237
    %496 = vmatprep.mubr.f32.mxu0 %v64
    %497 = vmatmul.mubr.f32.gmra.mrb[0].mxu0 %v63
    %v498 = vpop.f32.mrb[0].mxu0
    %v499 = vadd.f32 %v376, %v498
    %v500 = vpop.f32.mrb[0].mxu0
    %v501 = vadd.f32 %v380, %v500
    %502 = vmatprep.mubr.f32.mxu0 %v71
    %503 = vmatmul.mubr.f32.gmra.mrb[0].mxu0 %v70
    %v504 = vpop.f32.mrb[0].mxu0
    %v505 = vadd.f32 %v376, %v504
    %v506 = vpop.f32.mrb[0].mxu0
    %v507 = vadd.f32 %v380, %v506
    %508 = vmatprep.mubr.f32.mxu0 %v78
    %509 = vmatmul.mubr.f32.gmra.mrb[0].mxu0 %v77
    %v510 = vpop.f32.mrb[0].mxu0
    %v511 = vadd.f32 %v376, %v510
    %v512 = vpop.f32.mrb[0].mxu0
    %v513 = vadd.f32 %v380, %v512
    %514 = vmatprep.mubr.f32.mxu0 %v85
    %515 = vmatmul.mubr.f32.gmra.mrb[0].mxu0 %v84
    %v516 = vpop.f32.mrb[0].mxu0
    %v517 = vadd.f32 %v376, %v516
    %v518 = vpop.f32.mrb[0].mxu0
    %v519 = vadd.f32 %v380, %v518
    %520 = vmatprep.mubr.f32.mxu0 %v92
    %521 = vmatmul.mubr.f32.gmra.mrb[0].mxu0 %v91
    %v522 = vpop.f32.mrb[0].mxu0
    %v523 = vadd.f32 %v376, %v522
    %v524 = vpop.f32.mrb[0].mxu0
    %v525 = vadd.f32 %v380, %v524
    %526 = vmatprep.mubr.f32.mxu0 %v99
    %527 = vmatmul.mubr.f32.gmra.mrb[0].mxu0 %v98
    %v528 = vpop.f32.mrb[0].mxu0
    %v529 = vadd.f32 %v376, %v528
    %v530 = vpop.f32.mrb[0].mxu0
    %v531 = vadd.f32 %v380, %v530
    %532 = vmatprep.mubr.f32.mxu0 %v106
    %533 = vmatmul.mubr.f32.gmra.mrb[0].mxu0 %v105
    %v534 = vpop.f32.mrb[0].mxu0
    %v535 = vadd.f32 %v376, %v534
    %v536 = vpop.f32.mrb[0].mxu0
    %v537 = vadd.f32 %v380, %v536
    %538 = vmatprep.mubr.f32.mxu0 %v113
    %539 = vmatmul.mubr.f32.gmra.mrb[0].mxu0 %v112
    %v540 = vpop.f32.mrb[0].mxu0
    %v541 = vadd.f32 %v376, %v540
    %v542 = vpop.f32.mrb[0].mxu0
    %v543 = vadd.f32 %v380, %v542
    %544 = vmatprep.mubr.f32.mxu0 %v120
    %545 = vmatmul.mubr.f32.gmra.mrb[0].mxu0 %v119
    %v546 = vpop.f32.mrb[0].mxu0
    %v547 = vadd.f32 %v376, %v546
    %v548 = vpop.f32.mrb[0].mxu0
    %v549 = vadd.f32 %v380, %v548
    %550 = vmatprep.mubr.f32.mxu0 %v127
    %551 = vmatmul.mubr.f32.gmra.mrb[0].mxu0 %v126
    %v552 = vpop.f32.mrb[0].mxu0
    %v553 = vadd.f32 %v376, %v552
    %v554 = vpop.f32.mrb[0].mxu0
    %v555 = vadd.f32 %v380, %v554
    %556 = vmatprep.mubr.f32.mxu0 %v134
    %557 = vmatmul.mubr.f32.gmra.mrb[0].mxu0 %v133
    %v558 = vpop.f32.mrb[0].mxu0
    %v559 = vadd.f32 %v376, %v558
    %v560 = vpop.f32.mrb[0].mxu0
    %v561 = vadd.f32 %v380, %v560
    %562 = vmatprep.mubr.f32.mxu0 %v141
    %563 = vmatmul.mubr.f32.gmra.mrb[0].mxu0 %v140
    %v564 = vpop.f32.mrb[0].mxu0
    %v565 = vadd.f32 %v376, %v564
    %v566 = vpop.f32.mrb[0].mxu0
    %v567 = vadd.f32 %v380, %v566
    %568 = vmatprep.mubr.f32.mxu0 %v148
    %569 = vmatmul.mubr.f32.gmra.mrb[0].mxu0 %v147
    %v570 = vpop.f32.mrb[0].mxu0
    %v571 = vadd.f32 %v376, %v570
    %v572 = vpop.f32.mrb[0].mxu0
    %v573 = vadd.f32 %v380, %v572
    %574 = vmatprep.mubr.f32.mxu0 %v155
    %575 = vmatmul.mubr.f32.gmra.mrb[0].mxu0 %v154
    %v576 = vpop.f32.mrb[0].mxu0
    %v577 = vadd.f32 %v376, %v576
    %v578 = vpop.f32.mrb[0].mxu0
    %v579 = vadd.f32 %v380, %v578
    %580 = vmatprep.mubr.f32.mxu0 %v162
    %581 = vmatmul.mubr.f32.gmra.mrb[0].mxu0 %v161
    %v582 = vpop.f32.mrb[0].mxu0
    %v583 = vadd.f32 %v376, %v582
    %v584 = vpop.f32.mrb[0].mxu0
    %v585 = vadd.f32 %v380, %v584
    %586 = vmatprep.mubr.f32.mxu0 %v169
    %587 = vmatmul.mubr.f32.gmra.mrb[0].mxu0 %v168
    %v588 = vpop.f32.mrb[0].mxu0
    %v589 = vadd.f32 %v376, %v588
    %v590 = vpop.f32.mrb[0].mxu0
    %v591 = vadd.f32 %v380, %v590
    %592 = vdwg.mxu0
    %593 = vmatprep.subr.mxu0 %v240
    %594 = vmatpush1.msra.mxu0 %v239
    %595 = vmatprep.subr.mxu0 %v242
    %596 = vmatpush1.msra.mxu0 %v241
    %597 = vmatprep.subr.mxu0 %v244
    %598 = vmatpush1.msra.mxu0 %v243
    %599 = vmatprep.subr.mxu0 %v246
    %600 = vmatpush1.msra.mxu0 %v245
    %601 = vmatprep.subr.mxu0 %v248
    %602 = vmatpush1.msra.mxu0 %v247
    %603 = vmatprep.subr.mxu0 %v250
    %604 = vmatpush1.msra.mxu0 %v249
    %605 = vmatprep.subr.mxu0 %v252
    %606 = vmatpush1.msra.mxu0 %v251
    %607 = vmatprep.subr.mxu0 %v254
    %608 = vmatpush1.msra.mxu0 %v253
    %609 = vmatprep.subr.mxu0 %v256
    %610 = vmatpush1.msra.mxu0 %v255
    %611 = vmatprep.subr.mxu0 %v258
    %612 = vmatpush1.msra.mxu0 %v257
    %613 = vmatprep.subr.mxu0 %v260
    %614 = vmatpush1.msra.mxu0 %v259
    %615 = vmatprep.subr.mxu0 %v262
    %616 = vmatpush1.msra.mxu0 %v261
    %617 = vmatprep.subr.mxu0 %v264
    %618 = vmatpush1.msra.mxu0 %v263
    %619 = vmatprep.subr.mxu0 %v266
    %620 = vmatpush1.msra.mxu0 %v265
    %621 = vmatprep.subr.mxu0 %v268
    %622 = vmatpush1.msra.mxu0 %v267
    %623 = vmatprep.subr.mxu0 %v270
    %624 = vmatpush1.msra.mxu0 %v269
    %625 = vmatprep.subr.mxu0 %v272
    %626 = vmatpush1.msra.mxu0 %v271
    %627 = vmatprep.subr.mxu0 %v274
    %628 = vmatpush1.msra.mxu0 %v273
    %629 = vmatprep.subr.mxu0 %v276
    %630 = vmatpush1.msra.mxu0 %v275
    %631 = vmatprep.subr.mxu0 %v278
    %632 = vmatpush1.msra.mxu0 %v277
    %633 = vmatprep.subr.mxu0 %v280
    %634 = vmatpush1.msra.mxu0 %v279
    %635 = vmatprep.subr.mxu0 %v282
    %636 = vmatpush1.msra.mxu0 %v281
    %637 = vmatprep.subr.mxu0 %v284
    %638 = vmatpush1.msra.mxu0 %v283
    %639 = vmatprep.subr.mxu0 %v286
    %640 = vmatpush1.msra.mxu0 %v285
    %641 = vmatprep.subr.mxu0 %v288
    %642 = vmatpush1.msra.mxu0 %v287
    %643 = vmatprep.subr.mxu0 %v290
    %644 = vmatpush1.msra.mxu0 %v289
    %645 = vmatprep.subr.mxu0 %v292
    %646 = vmatpush1.msra.mxu0 %v291
    %647 = vmatprep.subr.mxu0 %v294
    %648 = vmatpush1.msra.mxu0 %v293
    %649 = vmatprep.subr.mxu0 %v296
    %650 = vmatpush1.msra.mxu0 %v295
    %651 = vmatprep.subr.mxu0 %v298
    %652 = vmatpush1.msra.mxu0 %v297
    %653 = vmatprep.subr.mxu0 %v300
    %654 = vmatpush1.msra.mxu0 %v299
    %655 = vmatprep.subr.mxu0 %v302
    %656 = vmatpush1.msra.mxu0 %v301
    %657 = vmatprep.mubr.f32.mxu0 %v66
    %658 = vmatmul.mubr.f32.gmra.mrb[0].mxu0 %v65
    %v659 = vpop.f32.mrb[0].mxu0
    %v660 = vadd.f32 %v499, %v659
    %v661 = vpop.f32.mrb[0].mxu0
    %v662 = vadd.f32 %v501, %v661
    %663 = vmatprep.mubr.f32.mxu0 %v73
    %664 = vmatmul.mubr.f32.gmra.mrb[0].mxu0 %v72
    %v665 = vpop.f32.mrb[0].mxu0
    %v666 = vadd.f32 %v505, %v665
    %v667 = vpop.f32.mrb[0].mxu0
    %v668 = vadd.f32 %v507, %v667
    %669 = vmatprep.mubr.f32.mxu0 %v80
    %670 = vmatmul.mubr.f32.gmra.mrb[0].mxu0 %v79
    %v671 = vpop.f32.mrb[0].mxu0
    %v672 = vadd.f32 %v511, %v671
    %v673 = vpop.f32.mrb[0].mxu0
    %v674 = vadd.f32 %v513, %v673
    %675 = vmatprep.mubr.f32.mxu0 %v87
    %676 = vmatmul.mubr.f32.gmra.mrb[0].mxu0 %v86
    %v677 = vpop.f32.mrb[0].mxu0
    %v678 = vadd.f32 %v517, %v677
    %v679 = vpop.f32.mrb[0].mxu0
    %v680 = vadd.f32 %v519, %v679
    %681 = vmatprep.mubr.f32.mxu0 %v94
    %682 = vmatmul.mubr.f32.gmra.mrb[0].mxu0 %v93
    %v683 = vpop.f32.mrb[0].mxu0
    %v684 = vadd.f32 %v523, %v683
    %v685 = vpop.f32.mrb[0].mxu0
    %v686 = vadd.f32 %v525, %v685
    %687 = vmatprep.mubr.f32.mxu0 %v101
    %688 = vmatmul.mubr.f32.gmra.mrb[0].mxu0 %v100
    %v689 = vpop.f32.mrb[0].mxu0
    %v690 = vadd.f32 %v529, %v689
    %v691 = vpop.f32.mrb[0].mxu0
    %v692 = vadd.f32 %v531, %v691
    %693 = vmatprep.mubr.f32.mxu0 %v108
    %694 = vmatmul.mubr.f32.gmra.mrb[0].mxu0 %v107
    %v695 = vpop.f32.mrb[0].mxu0
    %v696 = vadd.f32 %v535, %v695
    %v697 = vpop.f32.mrb[0].mxu0
    %v698 = vadd.f32 %v537, %v697
    %699 = vmatprep.mubr.f32.mxu0 %v115
    %700 = vmatmul.mubr.f32.gmra.mrb[0].mxu0 %v114
    %v701 = vpop.f32.mrb[0].mxu0
    %v702 = vadd.f32 %v541, %v701
    %v703 = vpop.f32.mrb[0].mxu0
    %v704 = vadd.f32 %v543, %v703
    %705 = vmatprep.mubr.f32.mxu0 %v122
    %706 = vmatmul.mubr.f32.gmra.mrb[0].mxu0 %v121
    %v707 = vpop.f32.mrb[0].mxu0
    %v708 = vadd.f32 %v547, %v707
    %v709 = vpop.f32.mrb[0].mxu0
    %v710 = vadd.f32 %v549, %v709
    %711 = vmatprep.mubr.f32.mxu0 %v129
    %712 = vmatmul.mubr.f32.gmra.mrb[0].mxu0 %v128
    %v713 = vpop.f32.mrb[0].mxu0
    %v714 = vadd.f32 %v553, %v713
    %v715 = vpop.f32.mrb[0].mxu0
    %v716 = vadd.f32 %v555, %v715
    %717 = vmatprep.mubr.f32.mxu0 %v136
    %718 = vmatmul.mubr.f32.gmra.mrb[0].mxu0 %v135
    %v719 = vpop.f32.mrb[0].mxu0
    %v720 = vadd.f32 %v559, %v719
    %v721 = vpop.f32.mrb[0].mxu0
    %v722 = vadd.f32 %v561, %v721
    %723 = vmatprep.mubr.f32.mxu0 %v143
    %724 = vmatmul.mubr.f32.gmra.mrb[0].mxu0 %v142
    %v725 = vpop.f32.mrb[0].mxu0
    %v726 = vadd.f32 %v565, %v725
    %v727 = vpop.f32.mrb[0].mxu0
    %v728 = vadd.f32 %v567, %v727
    %729 = vmatprep.mubr.f32.mxu0 %v150
    %730 = vmatmul.mubr.f32.gmra.mrb[0].mxu0 %v149
    %v731 = vpop.f32.mrb[0].mxu0
    %v732 = vadd.f32 %v571, %v731
    %v733 = vpop.f32.mrb[0].mxu0
    %v734 = vadd.f32 %v573, %v733
    %735 = vmatprep.mubr.f32.mxu0 %v157
    %736 = vmatmul.mubr.f32.gmra.mrb[0].mxu0 %v156
    %v737 = vpop.f32.mrb[0].mxu0
    %v738 = vadd.f32 %v577, %v737
    %v739 = vpop.f32.mrb[0].mxu0
    %v740 = vadd.f32 %v579, %v739
    %741 = vmatprep.mubr.f32.mxu0 %v164
    %742 = vmatmul.mubr.f32.gmra.mrb[0].mxu0 %v163
    %v743 = vpop.f32.mrb[0].mxu0
    %v744 = vadd.f32 %v583, %v743
    %v745 = vpop.f32.mrb[0].mxu0
    %v746 = vadd.f32 %v585, %v745
    %747 = vmatprep.mubr.f32.mxu0 %v171
    %748 = vmatmul.mubr.f32.gmra.mrb[0].mxu0 %v170
    %v749 = vpop.f32.mrb[0].mxu0
    %v750 = vadd.f32 %v589, %v749
    %v751 = vpop.f32.mrb[0].mxu0
    %v752 = vadd.f32 %v591, %v751
    %753 = vdwg.mxu0
    %754 = vmatprep.subr.mxu0 %v304
    %755 = vmatpush1.msra.mxu0 %v303
    %756 = vmatprep.subr.mxu0 %v306
    %757 = vmatpush1.msra.mxu0 %v305
    %758 = vmatprep.subr.mxu0 %v308
    %759 = vmatpush1.msra.mxu0 %v307
    %760 = vmatprep.subr.mxu0 %v310
    %761 = vmatpush1.msra.mxu0 %v309
    %762 = vmatprep.subr.mxu0 %v312
    %763 = vmatpush1.msra.mxu0 %v311
    %764 = vmatprep.subr.mxu0 %v314
    %765 = vmatpush1.msra.mxu0 %v313
    %766 = vmatprep.subr.mxu0 %v316
    %767 = vmatpush1.msra.mxu0 %v315
    %768 = vmatprep.subr.mxu0 %v318
    %769 = vmatpush1.msra.mxu0 %v317
    %770 = vmatprep.subr.mxu0 %v320
    %771 = vmatpush1.msra.mxu0 %v319
    %772 = vmatprep.subr.mxu0 %v322
    %773 = vmatpush1.msra.mxu0 %v321
    %774 = vmatprep.subr.mxu0 %v324
    %775 = vmatpush1.msra.mxu0 %v323
    %776 = vmatprep.subr.mxu0 %v326
    %777 = vmatpush1.msra.mxu0 %v325
    %778 = vmatprep.subr.mxu0 %v328
    %779 = vmatpush1.msra.mxu0 %v327
    %780 = vmatprep.subr.mxu0 %v330
    %781 = vmatpush1.msra.mxu0 %v329
    %782 = vmatprep.subr.mxu0 %v332
    %783 = vmatpush1.msra.mxu0 %v331
    %784 = vmatprep.subr.mxu0 %v334
    %785 = vmatpush1.msra.mxu0 %v333
    %786 = vmatprep.subr.mxu0 %v336
    %787 = vmatpush1.msra.mxu0 %v335
    %788 = vmatprep.subr.mxu0 %v338
    %789 = vmatpush1.msra.mxu0 %v337
    %790 = vmatprep.subr.mxu0 %v340
    %791 = vmatpush1.msra.mxu0 %v339
    %792 = vmatprep.subr.mxu0 %v342
    %793 = vmatpush1.msra.mxu0 %v341
    %794 = vmatprep.subr.mxu0 %v344
    %795 = vmatpush1.msra.mxu0 %v343
    %796 = vmatprep.subr.mxu0 %v346
    %797 = vmatpush1.msra.mxu0 %v345
    %798 = vmatprep.subr.mxu0 %v348
    %799 = vmatpush1.msra.mxu0 %v347
    %800 = vmatprep.subr.mxu0 %v350
    %801 = vmatpush1.msra.mxu0 %v349
    %802 = vmatprep.subr.mxu0 %v352
    %803 = vmatpush1.msra.mxu0 %v351
    %804 = vmatprep.subr.mxu0 %v354
    %805 = vmatpush1.msra.mxu0 %v353
    %806 = vmatprep.subr.mxu0 %v356
    %807 = vmatpush1.msra.mxu0 %v355
    %808 = vmatprep.subr.mxu0 %v358
    %809 = vmatpush1.msra.mxu0 %v357
    %810 = vmatprep.subr.mxu0 %v360
    %811 = vmatpush1.msra.mxu0 %v359
    %812 = vmatprep.subr.mxu0 %v362
    %813 = vmatpush1.msra.mxu0 %v361
    %814 = vmatprep.subr.mxu0 %v364
    %815 = vmatpush1.msra.mxu0 %v363
    %816 = vmatprep.subr.mxu0 %v366
    %817 = vmatpush1.msra.mxu0 %v365
    %818 = vmatprep.mubr.f32.mxu0 %v68
    %819 = vmatmul.mubr.f32.gmra.mrb[0].mxu0 %v67
    %v820 = vpop.f32.mrb[0].mxu0
    %v821 = vadd.f32 %v660, %v820
    %v822 = vpop.f32.mrb[0].mxu0
    %v823 = vadd.f32 %v662, %v822
    %824 = vmatprep.mubr.f32.mxu0 %v75
    %825 = vmatmul.mubr.f32.gmra.mrb[0].mxu0 %v74
    %v826 = vpop.f32.mrb[0].mxu0
    %v827 = vadd.f32 %v666, %v826
    %v828 = vpop.f32.mrb[0].mxu0
    %v829 = vadd.f32 %v668, %v828
    %830 = vmatprep.mubr.f32.mxu0 %v82
    %831 = vmatmul.mubr.f32.gmra.mrb[0].mxu0 %v81
    %v832 = vpop.f32.mrb[0].mxu0
    %v833 = vadd.f32 %v672, %v832
    %v834 = vpop.f32.mrb[0].mxu0
    %v835 = vadd.f32 %v674, %v834
    %836 = vmatprep.mubr.f32.mxu0 %v89
    %837 = vmatmul.mubr.f32.gmra.mrb[0].mxu0 %v88
    %v838 = vpop.f32.mrb[0].mxu0
    %v839 = vadd.f32 %v678, %v838
    %v840 = vpop.f32.mrb[0].mxu0
    %v841 = vadd.f32 %v680, %v840
    %842 = vmatprep.mubr.f32.mxu0 %v96
    %843 = vmatmul.mubr.f32.gmra.mrb[0].mxu0 %v95
    %v844 = vpop.f32.mrb[0].mxu0
    %v845 = vadd.f32 %v684, %v844
    %v846 = vpop.f32.mrb[0].mxu0
    %v847 = vadd.f32 %v686, %v846
    %848 = vmatprep.mubr.f32.mxu0 %v103
    %849 = vmatmul.mubr.f32.gmra.mrb[0].mxu0 %v102
    %v850 = vpop.f32.mrb[0].mxu0
    %v851 = vadd.f32 %v690, %v850
    %v852 = vpop.f32.mrb[0].mxu0
    %v853 = vadd.f32 %v692, %v852
    %854 = vmatprep.mubr.f32.mxu0 %v110
    %855 = vmatmul.mubr.f32.gmra.mrb[0].mxu0 %v109
    %v856 = vpop.f32.mrb[0].mxu0
    %v857 = vadd.f32 %v696, %v856
    %v858 = vpop.f32.mrb[0].mxu0
    %v859 = vadd.f32 %v698, %v858
    %860 = vmatprep.mubr.f32.mxu0 %v117
    %861 = vmatmul.mubr.f32.gmra.mrb[0].mxu0 %v116
    %v862 = vpop.f32.mrb[0].mxu0
    %v863 = vadd.f32 %v702, %v862
    %v864 = vpop.f32.mrb[0].mxu0
    %v865 = vadd.f32 %v704, %v864
    %866 = vmatprep.mubr.f32.mxu0 %v124
    %867 = vmatmul.mubr.f32.gmra.mrb[0].mxu0 %v123
    %v868 = vpop.f32.mrb[0].mxu0
    %v869 = vadd.f32 %v708, %v868
    %v870 = vpop.f32.mrb[0].mxu0
    %v871 = vadd.f32 %v710, %v870
    %872 = vmatprep.mubr.f32.mxu0 %v131
    %873 = vmatmul.mubr.f32.gmra.mrb[0].mxu0 %v130
    %v874 = vpop.f32.mrb[0].mxu0
    %v875 = vadd.f32 %v714, %v874
    %v876 = vpop.f32.mrb[0].mxu0
    %v877 = vadd.f32 %v716, %v876
    %878 = vmatprep.mubr.f32.mxu0 %v138
    %879 = vmatmul.mubr.f32.gmra.mrb[0].mxu0 %v137
    %v880 = vpop.f32.mrb[0].mxu0
    %v881 = vadd.f32 %v720, %v880
    %v882 = vpop.f32.mrb[0].mxu0
    %v883 = vadd.f32 %v722, %v882
    %884 = vmatprep.mubr.f32.mxu0 %v145
    %885 = vmatmul.mubr.f32.gmra.mrb[0].mxu0 %v144
    %v886 = vpop.f32.mrb[0].mxu0
    %v887 = vadd.f32 %v726, %v886
    %v888 = vpop.f32.mrb[0].mxu0
    %v889 = vadd.f32 %v728, %v888
    %890 = vmatprep.mubr.f32.mxu0 %v152
    %891 = vmatmul.mubr.f32.gmra.mrb[0].mxu0 %v151
    %v892 = vpop.f32.mrb[0].mxu0
    %v893 = vadd.f32 %v732, %v892
    %v894 = vpop.f32.mrb[0].mxu0
    %v895 = vadd.f32 %v734, %v894
    %896 = vmatprep.mubr.f32.mxu0 %v159
    %897 = vmatmul.mubr.f32.gmra.mrb[0].mxu0 %v158
    %v898 = vpop.f32.mrb[0].mxu0
    %v899 = vadd.f32 %v738, %v898
    %v900 = vpop.f32.mrb[0].mxu0
    %v901 = vadd.f32 %v740, %v900
    %902 = vmatprep.mubr.f32.mxu0 %v166
    %903 = vmatmul.mubr.f32.gmra.mrb[0].mxu0 %v165
    %v904 = vpop.f32.mrb[0].mxu0
    %v905 = vadd.f32 %v744, %v904
    %v906 = vpop.f32.mrb[0].mxu0
    %v907 = vadd.f32 %v746, %v906
    %908 = vmatprep.mubr.f32.mxu0 %v173
    %909 = vmatmul.mubr.f32.gmra.mrb[0].mxu0 %v172
    %v910 = vpop.f32.mrb[0].mxu0
    %v911 = vadd.f32 %v750, %v910
    %v912 = vpop.f32.mrb[0].mxu0
    %v913 = vadd.f32 %v752, %v912
    %914 = vdwg.mxu0
    %915 = vmatprep.subr.mxu0 %v368
    %916 = vmatpush1.msra.mxu0 %v367
    %917 = vmatprep.subr.mxu0 %v370
    %918 = vmatpush1.msra.mxu0 %v369
    %919 = vmatprep.subr.mxu0 0.0
    %920 = vmatpush1.msra.mxu0 0.0
    %921 = vmatprep.subr.mxu0 0.0
    %922 = vmatpush1.msra.mxu0 0.0
    %923 = vmatprep.subr.mxu0 0.0
    %924 = vmatpush1.msra.mxu0 0.0
    %925 = vmatprep.subr.mxu0 0.0
    %926 = vmatpush1.msra.mxu0 0.0
    %927 = vmatprep.subr.mxu0 0.0
    %928 = vmatpush1.msra.mxu0 0.0
    %929 = vmatprep.subr.mxu0 0.0
    %930 = vmatpush1.msra.mxu0 0.0
    %931 = vmatprep.subr.mxu0 0.0
    %932 = vmatpush1.msra.mxu0 0.0
    %933 = vmatprep.subr.mxu0 0.0
    %934 = vmatpush1.msra.mxu0 0.0
    %935 = vmatprep.subr.mxu0 0.0
    %936 = vmatpush1.msra.mxu0 0.0
    %937 = vmatprep.subr.mxu0 0.0
    %938 = vmatpush1.msra.mxu0 0.0
    %939 = vmatprep.subr.mxu0 0.0
    %940 = vmatpush1.msra.mxu0 0.0
    %941 = vmatprep.subr.mxu0 0.0
    %942 = vmatpush1.msra.mxu0 0.0
    %943 = vmatprep.subr.mxu0 0.0
    %944 = vmatpush1.msra.mxu0 0.0
    %945 = vmatprep.subr.mxu0 0.0
    %946 = vmatpush1.msra.mxu0 0.0
    %947 = vmatprep.subr.mxu0 0.0
    %948 = vmatpush1.msra.mxu0 0.0
    %949 = vmatprep.subr.mxu0 0.0
    %950 = vmatpush1.msra.mxu0 0.0
    %951 = vmatprep.subr.mxu0 0.0
    %952 = vmatpush1.msra.mxu0 0.0
    %953 = vmatprep.subr.mxu0 0.0
    %954 = vmatpush1.msra.mxu0 0.0
    %955 = vmatprep.subr.mxu0 0.0
    %956 = vmatpush1.msra.mxu0 0.0
    %957 = vmatprep.subr.mxu0 0.0
    %958 = vmatpush1.msra.mxu0 0.0
    %959 = vmatprep.subr.mxu0 0.0
    %960 = vmatpush1.msra.mxu0 0.0
    %961 = vmatprep.subr.mxu0 0.0
    %962 = vmatpush1.msra.mxu0 0.0
    %963 = vmatprep.subr.mxu0 0.0
    %964 = vmatpush1.msra.mxu0 0.0
    %965 = vmatprep.subr.mxu0 0.0
    %966 = vmatpush1.msra.mxu0 0.0
    %967 = vmatprep.subr.mxu0 0.0
    %968 = vmatpush1.msra.mxu0 0.0
    %969 = vmatprep.subr.mxu0 0.0
    %970 = vmatpush1.msra.mxu0 0.0
    %971 = vmatprep.subr.mxu0 0.0
    %972 = vmatpush1.msra.mxu0 0.0
    %973 = vmatprep.subr.mxu0 0.0
    %974 = vmatpush1.msra.mxu0 0.0
    %975 = vmatprep.subr.mxu0 0.0
    %976 = vmatpush1.msra.mxu0 0.0
    %977 = vmatprep.subr.mxu0 0.0
    %978 = vmatpush1.msra.mxu0 0.0
    %979 = vmatprep.mubr.f32.mxu0 0.0
    %980 = vmatmul.mubr.f32.gmra.mrb[0].mxu0 %v385
    %v981 = vpop.f32.mrb[0].mxu0
    %v982 = vadd.f32 %v821, %v981
    %v983 = vpop.f32.mrb[0].mxu0
    %v984 = vadd.f32 %v823, %v983
    %985 = vmatprep.mubr.f32.mxu0 0.0
    %986 = vmatmul.mubr.f32.gmra.mrb[0].mxu0 %v388
    %v987 = vpop.f32.mrb[0].mxu0
    %v988 = vadd.f32 %v827, %v987
    %v989 = vpop.f32.mrb[0].mxu0
    %v990 = vadd.f32 %v829, %v989
    %991 = vmatprep.mubr.f32.mxu0 0.0
    %992 = vmatmul.mubr.f32.gmra.mrb[0].mxu0 %v391
    %v993 = vpop.f32.mrb[0].mxu0
    %v994 = vadd.f32 %v833, %v993
    %v995 = vpop.f32.mrb[0].mxu0
    %v996 = vadd.f32 %v835, %v995
    %997 = vmatprep.mubr.f32.mxu0 0.0
    %998 = vmatmul.mubr.f32.gmra.mrb[0].mxu0 %v394
    %v999 = vpop.f32.mrb[0].mxu0
    %v1000 = vadd.f32 %v839, %v999
    %v1001 = vpop.f32.mrb[0].mxu0
    %v1002 = vadd.f32 %v841, %v1001
    %1003 = vmatprep.mubr.f32.mxu0 0.0
    %1004 = vmatmul.mubr.f32.gmra.mrb[0].mxu0 %v397
    %v1005 = vpop.f32.mrb[0].mxu0
    %v1006 = vadd.f32 %v845, %v1005
    %v1007 = vpop.f32.mrb[0].mxu0
    %v1008 = vadd.f32 %v847, %v1007
    %1009 = vmatprep.mubr.f32.mxu0 0.0
    %1010 = vmatmul.mubr.f32.gmra.mrb[0].mxu0 %v400
    %v1011 = vpop.f32.mrb[0].mxu0
    %v1012 = vadd.f32 %v851, %v1011
    %v1013 = vpop.f32.mrb[0].mxu0
    %v1014 = vadd.f32 %v853, %v1013
    %1015 = vmatprep.mubr.f32.mxu0 0.0
    %1016 = vmatmul.mubr.f32.gmra.mrb[0].mxu0 %v403
    %v1017 = vpop.f32.mrb[0].mxu0
    %v1018 = vadd.f32 %v857, %v1017
    %v1019 = vpop.f32.mrb[0].mxu0
    %v1020 = vadd.f32 %v859, %v1019
    %1021 = vmatprep.mubr.f32.mxu0 0.0
    %1022 = vmatmul.mubr.f32.gmra.mrb[0].mxu0 %v406
    %v1023 = vpop.f32.mrb[0].mxu0
    %v1024 = vadd.f32 %v863, %v1023
    %v1025 = vpop.f32.mrb[0].mxu0
    %v1026 = vadd.f32 %v865, %v1025
    %1027 = vmatprep.mubr.f32.mxu0 0.0
    %1028 = vmatmul.mubr.f32.gmra.mrb[0].mxu0 %v409
    %v1029 = vpop.f32.mrb[0].mxu0
    %v1030 = vadd.f32 %v869, %v1029
    %v1031 = vpop.f32.mrb[0].mxu0
    %v1032 = vadd.f32 %v871, %v1031
    %1033 = vmatprep.mubr.f32.mxu0 0.0
    %1034 = vmatmul.mubr.f32.gmra.mrb[0].mxu0 %v412
    %v1035 = vpop.f32.mrb[0].mxu0
    %v1036 = vadd.f32 %v875, %v1035
    %v1037 = vpop.f32.mrb[0].mxu0
    %v1038 = vadd.f32 %v877, %v1037
    %1039 = vmatprep.mubr.f32.mxu0 0.0
    %1040 = vmatmul.mubr.f32.gmra.mrb[0].mxu0 %v415
    %v1041 = vpop.f32.mrb[0].mxu0
    %v1042 = vadd.f32 %v881, %v1041
    %v1043 = vpop.f32.mrb[0].mxu0
    %v1044 = vadd.f32 %v883, %v1043
    %1045 = vmatprep.mubr.f32.mxu0 0.0
    %1046 = vmatmul.mubr.f32.gmra.mrb[0].mxu0 %v418
    %v1047 = vpop.f32.mrb[0].mxu0
    %v1048 = vadd.f32 %v887, %v1047
    %v1049 = vpop.f32.mrb[0].mxu0
    %v1050 = vadd.f32 %v889, %v1049
    %1051 = vmatprep.mubr.f32.mxu0 0.0
    %1052 = vmatmul.mubr.f32.gmra.mrb[0].mxu0 %v421
    %v1053 = vpop.f32.mrb[0].mxu0
    %v1054 = vadd.f32 %v893, %v1053
    %v1055 = vpop.f32.mrb[0].mxu0
    %v1056 = vadd.f32 %v895, %v1055
    %1057 = vmatprep.mubr.f32.mxu0 0.0
    %1058 = vmatmul.mubr.f32.gmra.mrb[0].mxu0 %v424
    %v1059 = vpop.f32.mrb[0].mxu0
    %v1060 = vadd.f32 %v899, %v1059
    %v1061 = vpop.f32.mrb[0].mxu0
    %v1062 = vadd.f32 %v901, %v1061
    %1063 = vmatprep.mubr.f32.mxu0 0.0
    %1064 = vmatmul.mubr.f32.gmra.mrb[0].mxu0 %v427
    %v1065 = vpop.f32.mrb[0].mxu0
    %v1066 = vadd.f32 %v905, %v1065
    %v1067 = vpop.f32.mrb[0].mxu0
    %v1068 = vadd.f32 %v907, %v1067
    %1069 = vmatprep.mubr.f32.mxu0 0.0
    %1070 = vmatmul.mubr.f32.gmra.mrb[0].mxu0 %v430
    %v1071 = vpop.f32.mrb[0].mxu0
    %v1072 = vadd.f32 %v911, %v1071
    %v1073 = vpop.f32.mrb[0].mxu0
    %v1074 = vadd.f32 %v913, %v1073
    %1075 = vdwg.mxu0
    %v1076 = vmax.f32 %v982, 0.0
    %v1077 = vmax.f32 %v984, 0.0
    %v1078 = vmax.f32 %v988, 0.0
    %v1079 = vmax.f32 %v990, 0.0
    %v1080 = vmax.f32 %v994, 0.0
    %v1081 = vmax.f32 %v996, 0.0
    %v1082 = vmax.f32 %v1000, 0.0
    %v1083 = vmax.f32 %v1002, 0.0
    %v1084 = vmax.f32 %v1006, 0.0
    %v1085 = vmax.f32 %v1008, 0.0
    %v1086 = vmax.f32 %v1012, 0.0
    %v1087 = vmax.f32 %v1014, 0.0
    %v1088 = vmax.f32 %v1018, 0.0
    %v1089 = vmax.f32 %v1020, 0.0
    %v1090 = vmax.f32 %v1024, 0.0
    %v1091 = vmax.f32 %v1026, 0.0
    %v1092 = vmax.f32 %v1030, 0.0
    %v1093 = vmax.f32 %v1032, 0.0
    %v1094 = vmax.f32 %v1036, 0.0
    %v1095 = vmax.f32 %v1038, 0.0
    %v1096 = vmax.f32 %v1042, 0.0
    %v1097 = vmax.f32 %v1044, 0.0
    %v1098 = vmax.f32 %v1048, 0.0
    %v1099 = vmax.f32 %v1050, 0.0
    %v1100 = vmax.f32 %v1054, 0.0
    %v1101 = vmax.f32 %v1056, 0.0
    %v1102 = vmax.f32 %v1060, 0.0
    %v1103 = vmax.f32 %v1062, 0.0
    %v1104 = vmax.f32 %v1066, 0.0
    %v1105 = vmax.f32 %v1068, 0.0
    %v1106 = vmax.f32 %v1072, 0.0
    %v1107 = vmax.f32 %v1074, 0.0
    %v1108 = vld [vmem:[#allocation2] sm:$0xff]
    %v1109 = vld [vmem:[#allocation2 + $0x8] sm:$0xff]
    %v1110 = vld [vmem:[#allocation2 + $0x10] sm:$0xff]
    %v1111 = vld [vmem:[#allocation2 + $0x18] sm:$0xff]
    %v1112 = vld [vmem:[#allocation2 + $0x20] sm:$0xff]
    %v1113 = vld [vmem:[#allocation2 + $0x28] sm:$0xff]
    %v1114 = vld [vmem:[#allocation2 + $0x30] sm:$0xff]
    %v1115 = vld [vmem:[#allocation2 + $0x38] sm:$0xff]
    %v1116 = vld [vmem:[#allocation2 + $0x40] sm:$0xff]
    %v1117 = vld [vmem:[#allocation2 + $0x48] sm:$0xff]
    %v1118 = vld [vmem:[#allocation2 + $0x50] sm:$0xff]
    %v1119 = vld [vmem:[#allocation2 + $0x58] sm:$0xff]
    %v1120 = vld [vmem:[#allocation2 + $0x60] sm:$0xff]
    %v1121 = vld [vmem:[#allocation2 + $0x68] sm:$0xff]
    %v1122 = vld [vmem:[#allocation2 + $0x70] sm:$0xff]
    %v1123 = vld [vmem:[#allocation2 + $0x78] sm:$0xff]
    %v1124 = vld [vmem:[#allocation2 + $0x80] sm:$0xff]
    %v1125 = vld [vmem:[#allocation2 + $0x88] sm:$0xff]
    %v1126 = vld [vmem:[#allocation2 + $0x90] sm:$0xff]
    %v1127 = vld [vmem:[#allocation2 + $0x98] sm:$0xff]
    %v1128 = vld [vmem:[#allocation2 + $0xa0] sm:$0xff]
    %v1129 = vld [vmem:[#allocation2 + $0xa8] sm:$0xff]
    %v1130 = vld [vmem:[#allocation2 + $0xb0] sm:$0xff]
    %v1131 = vld [vmem:[#allocation2 + $0xb8] sm:$0xff]
    %v1132 = vld [vmem:[#allocation2 + $0xc0] sm:$0xff]
    %v1133 = vld [vmem:[#allocation2 + $0xc8] sm:$0xff]
    %v1134 = vld [vmem:[#allocation2 + $0xd0] sm:$0xff]
    %v1135 = vld [vmem:[#allocation2 + $0xd8] sm:$0xff]
    %v1136 = vld [vmem:[#allocation2 + $0xe0] sm:$0xff]
    %v1137 = vld [vmem:[#allocation2 + $0xe8] sm:$0xff]
    %v1138 = vld [vmem:[#allocation2 + $0xf0] sm:$0xff]
    %v1139 = vld [vmem:[#allocation2 + $0xf8] sm:$0xff]
    %v1140 = vld [vmem:[#allocation4] sm:$0x1]
    %v1142 = vlaneseq
    %v1143 = vshrl.u32 %v1142, 7
    %v1144 = vsub.s32 0, %v1143
    %v1145 = vrot.slane %v1140, %v1144
    %1147 = vmatprep.subr.mxu0 0.0
    %1148 = vmatpush1.msra.mxu0 %v1108
    %1149 = vmatprep.subr.mxu0 0.0
    %1150 = vmatpush1.msra.mxu0 %v1109
    %1151 = vmatprep.subr.mxu0 0.0
    %1152 = vmatpush1.msra.mxu0 %v1110
    %1153 = vmatprep.subr.mxu0 0.0
    %1154 = vmatpush1.msra.mxu0 %v1111
    %1155 = vmatprep.subr.mxu0 0.0
    %1156 = vmatpush1.msra.mxu0 %v1112
    %1157 = vmatprep.subr.mxu0 0.0
    %1158 = vmatpush1.msra.mxu0 %v1113
    %1159 = vmatprep.subr.mxu0 0.0
    %1160 = vmatpush1.msra.mxu0 %v1114
    %1161 = vmatprep.subr.mxu0 0.0
    %1162 = vmatpush1.msra.mxu0 %v1115
    %1163 = vmatprep.subr.mxu0 0.0
    %1164 = vmatpush1.msra.mxu0 %v1116
    %1165 = vmatprep.subr.mxu0 0.0
    %1166 = vmatpush1.msra.mxu0 %v1117
    %1167 = vmatprep.subr.mxu0 0.0
    %1168 = vmatpush1.msra.mxu0 %v1118
    %1169 = vmatprep.subr.mxu0 0.0
    %1170 = vmatpush1.msra.mxu0 %v1119
    %1171 = vmatprep.subr.mxu0 0.0
    %1172 = vmatpush1.msra.mxu0 %v1120
    %1173 = vmatprep.subr.mxu0 0.0
    %1174 = vmatpush1.msra.mxu0 %v1121
    %1175 = vmatprep.subr.mxu0 0.0
    %1176 = vmatpush1.msra.mxu0 %v1122
    %1177 = vmatprep.subr.mxu0 0.0
    %1178 = vmatpush1.msra.mxu0 %v1123
    %1179 = vmatprep.subr.mxu0 0.0
    %1180 = vmatpush1.msra.mxu0 %v1124
    %1181 = vmatprep.subr.mxu0 0.0
    %1182 = vmatpush1.msra.mxu0 %v1125
    %1183 = vmatprep.subr.mxu0 0.0
    %1184 = vmatpush1.msra.mxu0 %v1126
    %1185 = vmatprep.subr.mxu0 0.0
    %1186 = vmatpush1.msra.mxu0 %v1127
    %1187 = vmatprep.subr.mxu0 0.0
    %1188 = vmatpush1.msra.mxu0 %v1128
    %1189 = vmatprep.subr.mxu0 0.0
    %1190 = vmatpush1.msra.mxu0 %v1129
    %1191 = vmatprep.subr.mxu0 0.0
    %1192 = vmatpush1.msra.mxu0 %v1130
    %1193 = vmatprep.subr.mxu0 0.0
    %1194 = vmatpush1.msra.mxu0 %v1131
    %1195 = vmatprep.subr.mxu0 0.0
    %1196 = vmatpush1.msra.mxu0 %v1132
    %1197 = vmatprep.subr.mxu0 0.0
    %1198 = vmatpush1.msra.mxu0 %v1133
    %1199 = vmatprep.subr.mxu0 0.0
    %1200 = vmatpush1.msra.mxu0 %v1134
    %1201 = vmatprep.subr.mxu0 0.0
    %1202 = vmatpush1.msra.mxu0 %v1135
    %1203 = vmatprep.subr.mxu0 0.0
    %1204 = vmatpush1.msra.mxu0 %v1136
    %1205 = vmatprep.subr.mxu0 0.0
    %1206 = vmatpush1.msra.mxu0 %v1137
    %1207 = vmatprep.subr.mxu0 0.0
    %1208 = vmatpush1.msra.mxu0 %v1138
    %1209 = vmatprep.subr.mxu0 0.0
    %1210 = vmatpush1.msra.mxu0 %v1139
    %1211 = vmatprep.mubr.f32.mxu0 %v1077
    %1212 = vmatmul.mubr.f32.gmra.mrb[0].mxu0 %v1076
    %v1213 = vpop.f32.mrb[0].mxu0
    %v1214 = vadd.f32 %v1145, %v1213
    %v1215 = vpop.f32.mrb[0].mxu0
    %1216 = vmatprep.mubr.f32.mxu0 %v1079
    %1217 = vmatmul.mubr.f32.gmra.mrb[0].mxu0 %v1078
    %v1218 = vpop.f32.mrb[0].mxu0
    %v1219 = vadd.f32 %v1145, %v1218
    %v1220 = vpop.f32.mrb[0].mxu0
    %1221 = vmatprep.mubr.f32.mxu0 %v1081
    %1222 = vmatmul.mubr.f32.gmra.mrb[0].mxu0 %v1080
    %v1223 = vpop.f32.mrb[0].mxu0
    %v1224 = vadd.f32 %v1145, %v1223
    %v1225 = vpop.f32.mrb[0].mxu0
    %1226 = vmatprep.mubr.f32.mxu0 %v1083
    %1227 = vmatmul.mubr.f32.gmra.mrb[0].mxu0 %v1082
    %v1228 = vpop.f32.mrb[0].mxu0
    %v1229 = vadd.f32 %v1145, %v1228
    %v1230 = vpop.f32.mrb[0].mxu0
    %1231 = vmatprep.mubr.f32.mxu0 %v1085
    %1232 = vmatmul.mubr.f32.gmra.mrb[0].mxu0 %v1084
    %v1233 = vpop.f32.mrb[0].mxu0
    %v1234 = vadd.f32 %v1145, %v1233
    %v1235 = vpop.f32.mrb[0].mxu0
    %1236 = vmatprep.mubr.f32.mxu0 %v1087
    %1237 = vmatmul.mubr.f32.gmra.mrb[0].mxu0 %v1086
    %v1238 = vpop.f32.mrb[0].mxu0
    %v1239 = vadd.f32 %v1145, %v1238
    %v1240 = vpop.f32.mrb[0].mxu0
    %1241 = vmatprep.mubr.f32.mxu0 %v1089
    %1242 = vmatmul.mubr.f32.gmra.mrb[0].mxu0 %v1088
    %v1243 = vpop.f32.mrb[0].mxu0
    %v1244 = vadd.f32 %v1145, %v1243
    %v1245 = vpop.f32.mrb[0].mxu0
    %1246 = vmatprep.mubr.f32.mxu0 %v1091
    %1247 = vmatmul.mubr.f32.gmra.mrb[0].mxu0 %v1090
    %v1248 = vpop.f32.mrb[0].mxu0
    %v1249 = vadd.f32 %v1145, %v1248
    %v1250 = vpop.f32.mrb[0].mxu0
    %1251 = vmatprep.mubr.f32.mxu0 %v1093
    %1252 = vmatmul.mubr.f32.gmra.mrb[0].mxu0 %v1092
    %v1253 = vpop.f32.mrb[0].mxu0
    %v1254 = vadd.f32 %v1145, %v1253
    %v1255 = vpop.f32.mrb[0].mxu0
    %1256 = vmatprep.mubr.f32.mxu0 %v1095
    %1257 = vmatmul.mubr.f32.gmra.mrb[0].mxu0 %v1094
    %v1258 = vpop.f32.mrb[0].mxu0
    %v1259 = vadd.f32 %v1145, %v1258
    %v1260 = vpop.f32.mrb[0].mxu0
    %1261 = vmatprep.mubr.f32.mxu0 %v1097
    %1262 = vmatmul.mubr.f32.gmra.mrb[0].mxu0 %v1096
    %v1263 = vpop.f32.mrb[0].mxu0
    %v1264 = vadd.f32 %v1145, %v1263
    %v1265 = vpop.f32.mrb[0].mxu0
    %1266 = vmatprep.mubr.f32.mxu0 %v1099
    %1267 = vmatmul.mubr.f32.gmra.mrb[0].mxu0 %v1098
    %v1268 = vpop.f32.mrb[0].mxu0
    %v1269 = vadd.f32 %v1145, %v1268
    %v1270 = vpop.f32.mrb[0].mxu0
    %1271 = vmatprep.mubr.f32.mxu0 %v1101
    %1272 = vmatmul.mubr.f32.gmra.mrb[0].mxu0 %v1100
    %v1273 = vpop.f32.mrb[0].mxu0
    %v1274 = vadd.f32 %v1145, %v1273
    %v1275 = vpop.f32.mrb[0].mxu0
    %1276 = vmatprep.mubr.f32.mxu0 %v1103
    %1277 = vmatmul.mubr.f32.gmra.mrb[0].mxu0 %v1102
    %v1278 = vpop.f32.mrb[0].mxu0
    %v1279 = vadd.f32 %v1145, %v1278
    %v1280 = vpop.f32.mrb[0].mxu0
    %1281 = vmatprep.mubr.f32.mxu0 %v1105
    %1282 = vmatmul.mubr.f32.gmra.mrb[0].mxu0 %v1104
    %v1283 = vpop.f32.mrb[0].mxu0
    %v1284 = vadd.f32 %v1145, %v1283
    %v1285 = vpop.f32.mrb[0].mxu0
    %1286 = vmatprep.mubr.f32.mxu0 %v1107
    %1287 = vmatmul.mubr.f32.gmra.mrb[0].mxu0 %v1106
    %v1288 = vpop.f32.mrb[0].mxu0
    %v1289 = vadd.f32 %v1145, %v1288
    %v1290 = vpop.f32.mrb[0].mxu0
    %1291 = vdwg.mxu0
    %v1292 = vmax.f32 %v1214, 0.0
    %v1293 = vmax.f32 %v1219, 0.0
    %v1294 = vmax.f32 %v1224, 0.0
    %v1295 = vmax.f32 %v1229, 0.0
    %v1296 = vmax.f32 %v1234, 0.0
    %v1297 = vmax.f32 %v1239, 0.0
    %v1298 = vmax.f32 %v1244, 0.0
    %v1299 = vmax.f32 %v1249, 0.0
    %v1300 = vmax.f32 %v1254, 0.0
    %v1301 = vmax.f32 %v1259, 0.0
    %v1302 = vmax.f32 %v1264, 0.0
    %v1303 = vmax.f32 %v1269, 0.0
    %v1304 = vmax.f32 %v1274, 0.0
    %v1305 = vmax.f32 %v1279, 0.0
    %v1306 = vmax.f32 %v1284, 0.0
    %v1307 = vmax.f32 %v1289, 0.0
    %v1308 = vld [vmem:[%s5] sm:$0xff]
    %v1309 = vld [vmem:[%s5 + $0x8] sm:$0xff]
    %v1310 = vld [vmem:[%s5 + $0x10] sm:$0xff]
    %v1311 = vld [vmem:[%s5 + $0x18] sm:$0xff]
    %v1312 = vld [vmem:[%s5 + $0x20] sm:$0xff]
    %v1313 = vld [vmem:[%s5 + $0x28] sm:$0xff]
    %v1314 = vld [vmem:[%s5 + $0x30] sm:$0xff]
    %v1315 = vld [vmem:[%s5 + $0x38] sm:$0xff]
    %v1316 = vld [vmem:[%s5 + $0x40] sm:$0xff]
    %v1317 = vld [vmem:[%s5 + $0x48] sm:$0xff]
    %v1318 = vld [vmem:[%s5 + $0x50] sm:$0xff]
    %v1319 = vld [vmem:[%s5 + $0x58] sm:$0xff]
    %v1320 = vld [vmem:[%s5 + $0x60] sm:$0xff]
    %v1321 = vld [vmem:[%s5 + $0x68] sm:$0xff]
    %v1322 = vld [vmem:[%s5 + $0x70] sm:$0xff]
    %v1323 = vld [vmem:[%s5 + $0x78] sm:$0xff]
    %v1324 = vld [vmem:[#allocation6] sm:$0x1]
    %v1326 = vlaneseq
    %v1327 = vshrl.u32 %v1326, 7
    %v1328 = vsub.s32 0, %v1327
    %v1329 = vrot.slane %v1324, %v1328
    %1331 = vmatprep.subr.mxu0 0.0
    %1332 = vmatpush1.msra.mxu0 %v1308
    %1333 = vmatprep.subr.mxu0 0.0
    %1334 = vmatpush1.msra.mxu0 %v1309
    %1335 = vmatprep.subr.mxu0 0.0
    %1336 = vmatpush1.msra.mxu0 %v1310
    %1337 = vmatprep.subr.mxu0 0.0
    %1338 = vmatpush1.msra.mxu0 %v1311
    %1339 = vmatprep.subr.mxu0 0.0
    %1340 = vmatpush1.msra.mxu0 %v1312
    %1341 = vmatprep.subr.mxu0 0.0
    %1342 = vmatpush1.msra.mxu0 %v1313
    %1343 = vmatprep.subr.mxu0 0.0
    %1344 = vmatpush1.msra.mxu0 %v1314
    %1345 = vmatprep.subr.mxu0 0.0
    %1346 = vmatpush1.msra.mxu0 %v1315
    %1347 = vmatprep.subr.mxu0 0.0
    %1348 = vmatpush1.msra.mxu0 %v1316
    %1349 = vmatprep.subr.mxu0 0.0
    %1350 = vmatpush1.msra.mxu0 %v1317
    %1351 = vmatprep.subr.mxu0 0.0
    %1352 = vmatpush1.msra.mxu0 %v1318
    %1353 = vmatprep.subr.mxu0 0.0
    %1354 = vmatpush1.msra.mxu0 %v1319
    %1355 = vmatprep.subr.mxu0 0.0
    %1356 = vmatpush1.msra.mxu0 %v1320
    %1357 = vmatprep.subr.mxu0 0.0
    %1358 = vmatpush1.msra.mxu0 %v1321
    %1359 = vmatprep.subr.mxu0 0.0
    %1360 = vmatpush1.msra.mxu0 %v1322
    %1361 = vmatprep.subr.mxu0 0.0
    %1362 = vmatpush1.msra.mxu0 %v1323
    %1363 = vmatprep.subr.mxu0 0.0
    %1364 = vmatpush1.msra.mxu0 0.0
    %1365 = vmatprep.subr.mxu0 0.0
    %1366 = vmatpush1.msra.mxu0 0.0
    %1367 = vmatprep.subr.mxu0 0.0
    %1368 = vmatpush1.msra.mxu0 0.0
    %1369 = vmatprep.subr.mxu0 0.0
    %1370 = vmatpush1.msra.mxu0 0.0
    %1371 = vmatprep.subr.mxu0 0.0
    %1372 = vmatpush1.msra.mxu0 0.0
    %1373 = vmatprep.subr.mxu0 0.0
    %1374 = vmatpush1.msra.mxu0 0.0
    %1375 = vmatprep.subr.mxu0 0.0
    %1376 = vmatpush1.msra.mxu0 0.0
    %1377 = vmatprep.subr.mxu0 0.0
    %1378 = vmatpush1.msra.mxu0 0.0
    %1379 = vmatprep.subr.mxu0 0.0
    %1380 = vmatpush1.msra.mxu0 0.0
    %1381 = vmatprep.subr.mxu0 0.0
    %1382 = vmatpush1.msra.mxu0 0.0
    %1383 = vmatprep.subr.mxu0 0.0
    %1384 = vmatpush1.msra.mxu0 0.0
    %1385 = vmatprep.subr.mxu0 0.0
    %1386 = vmatpush1.msra.mxu0 0.0
    %1387 = vmatprep.subr.mxu0 0.0
    %1388 = vmatpush1.msra.mxu0 0.0
    %1389 = vmatprep.subr.mxu0 0.0
    %1390 = vmatpush1.msra.mxu0 0.0
    %1391 = vmatprep.subr.mxu0 0.0
    %1392 = vmatpush1.msra.mxu0 0.0
    %1393 = vmatprep.subr.mxu0 0.0
    %1394 = vmatpush1.msra.mxu0 0.0
    %1395 = vmatprep.mubr.f32.mxu0 0.0
    %1396 = vmatmul.mubr.f32.gmra.mrb[0].mxu0 %v1292
    %v1397 = vpop.f32.mrb[0].mxu0
    %v1398 = vadd.f32 %v1329, %v1397
    %v1399 = vpop.f32.mrb[0].mxu0
    %1400 = vmatprep.mubr.f32.mxu0 0.0
    %1401 = vmatmul.mubr.f32.gmra.mrb[0].mxu0 %v1293
    %v1402 = vpop.f32.mrb[0].mxu0
    %v1403 = vadd.f32 %v1329, %v1402
    %v1404 = vpop.f32.mrb[0].mxu0
    %1405 = vmatprep.mubr.f32.mxu0 0.0
    %1406 = vmatmul.mubr.f32.gmra.mrb[0].mxu0 %v1294
    %v1407 = vpop.f32.mrb[0].mxu0
    %v1408 = vadd.f32 %v1329, %v1407
    %v1409 = vpop.f32.mrb[0].mxu0
    %1410 = vmatprep.mubr.f32.mxu0 0.0
    %1411 = vmatmul.mubr.f32.gmra.mrb[0].mxu0 %v1295
    %v1412 = vpop.f32.mrb[0].mxu0
    %v1413 = vadd.f32 %v1329, %v1412
    %v1414 = vpop.f32.mrb[0].mxu0
    %1415 = vmatprep.mubr.f32.mxu0 0.0
    %1416 = vmatmul.mubr.f32.gmra.mrb[0].mxu0 %v1296
    %v1417 = vpop.f32.mrb[0].mxu0
    %v1418 = vadd.f32 %v1329, %v1417
    %v1419 = vpop.f32.mrb[0].mxu0
    %1420 = vmatprep.mubr.f32.mxu0 0.0
    %1421 = vmatmul.mubr.f32.gmra.mrb[0].mxu0 %v1297
    %v1422 = vpop.f32.mrb[0].mxu0
    %v1423 = vadd.f32 %v1329, %v1422
    %v1424 = vpop.f32.mrb[0].mxu0
    %1425 = vmatprep.mubr.f32.mxu0 0.0
    %1426 = vmatmul.mubr.f32.gmra.mrb[0].mxu0 %v1298
    %v1427 = vpop.f32.mrb[0].mxu0
    %v1428 = vadd.f32 %v1329, %v1427
    %v1429 = vpop.f32.mrb[0].mxu0
    %1430 = vmatprep.mubr.f32.mxu0 0.0
    %1431 = vmatmul.mubr.f32.gmra.mrb[0].mxu0 %v1299
    %v1432 = vpop.f32.mrb[0].mxu0
    %v1433 = vadd.f32 %v1329, %v1432
    %v1434 = vpop.f32.mrb[0].mxu0
    %1435 = vmatprep.mubr.f32.mxu0 0.0
    %1436 = vmatmul.mubr.f32.gmra.mrb[0].mxu0 %v1300
    %v1437 = vpop.f32.mrb[0].mxu0
    %v1438 = vadd.f32 %v1329, %v1437
    %v1439 = vpop.f32.mrb[0].mxu0
    %1440 = vmatprep.mubr.f32.mxu0 0.0
    %1441 = vmatmul.mubr.f32.gmra.mrb[0].mxu0 %v1301
    %v1442 = vpop.f32.mrb[0].mxu0
    %v1443 = vadd.f32 %v1329, %v1442
    %v1444 = vpop.f32.mrb[0].mxu0
    %1445 = vmatprep.mubr.f32.mxu0 0.0
    %1446 = vmatmul.mubr.f32.gmra.mrb[0].mxu0 %v1302
    %v1447 = vpop.f32.mrb[0].mxu0
    %v1448 = vadd.f32 %v1329, %v1447
    %v1449 = vpop.f32.mrb[0].mxu0
    %1450 = vmatprep.mubr.f32.mxu0 0.0
    %1451 = vmatmul.mubr.f32.gmra.mrb[0].mxu0 %v1303
    %v1452 = vpop.f32.mrb[0].mxu0
    %v1453 = vadd.f32 %v1329, %v1452
    %v1454 = vpop.f32.mrb[0].mxu0
    %1455 = vmatprep.mubr.f32.mxu0 0.0
    %1456 = vmatmul.mubr.f32.gmra.mrb[0].mxu0 %v1304
    %v1457 = vpop.f32.mrb[0].mxu0
    %v1458 = vadd.f32 %v1329, %v1457
    %v1459 = vpop.f32.mrb[0].mxu0
    %1460 = vmatprep.mubr.f32.mxu0 0.0
    %1461 = vmatmul.mubr.f32.gmra.mrb[0].mxu0 %v1305
    %v1462 = vpop.f32.mrb[0].mxu0
    %v1463 = vadd.f32 %v1329, %v1462
    %v1464 = vpop.f32.mrb[0].mxu0
    %1465 = vmatprep.mubr.f32.mxu0 0.0
    %1466 = vmatmul.mubr.f32.gmra.mrb[0].mxu0 %v1306
    %v1467 = vpop.f32.mrb[0].mxu0
    %v1468 = vadd.f32 %v1329, %v1467
    %v1469 = vpop.f32.mrb[0].mxu0
    %1470 = vmatprep.mubr.f32.mxu0 0.0
    %1471 = vmatmul.mubr.f32.gmra.mrb[0].mxu0 %v1307
    %v1472 = vpop.f32.mrb[0].mxu0
    %v1473 = vadd.f32 %v1329, %v1472
    %v1474 = vpop.f32.mrb[0].mxu0
    %1475 = vdwg.mxu0
    %1476 = vst [vmem:[%s7] sm:$0xff] %v1398
    %1477 = vst [vmem:[%s7 + $0x8] sm:$0xff] %v1403
    %1478 = vst [vmem:[%s7 + $0x10] sm:$0xff] %v1408
    %1479 = vst [vmem:[%s7 + $0x18] sm:$0xff] %v1413
    %1480 = vst [vmem:[%s7 + $0x20] sm:$0xff] %v1418
    %1481 = vst [vmem:[%s7 + $0x28] sm:$0xff] %v1423
    %1482 = vst [vmem:[%s7 + $0x30] sm:$0xff] %v1428
    %1483 = vst [vmem:[%s7 + $0x38] sm:$0xff] %v1433
    %1484 = vst [vmem:[%s7 + $0x40] sm:$0xff] %v1438
    %1485 = vst [vmem:[%s7 + $0x48] sm:$0xff] %v1443
    %1486 = vst [vmem:[%s7 + $0x50] sm:$0xff] %v1448
    %1487 = vst [vmem:[%s7 + $0x58] sm:$0xff] %v1453
    %1488 = vst [vmem:[%s7 + $0x60] sm:$0xff] %v1458
    %1489 = vst [vmem:[%s7 + $0x68] sm:$0xff] %v1463
    %1490 = vst [vmem:[%s7 + $0x70] sm:$0xff] %v1468
    %1491 = vst [vmem:[%s7 + $0x78] sm:$0xff] %v1473
    // Predicated region
    $region42: #{base_neural_net_forward.1} parent=1 // pred_check
      _
    $region43: #{base_neural_net_forward.1} parent=1 // pred_check_branch
      %1493 = sbr.rel (0) target = $region45
    $region44: #{base_neural_net_forward.1} parent=1 // pred_region
      _
    $region45: #{base_neural_net_forward.1} parent=1 // pred_fallthru
      _
    // Predicated region
    $region46: #{base_neural_net_forward.1} parent=1 // pred_check
      _
    $region47: #{base_neural_net_forward.1} parent=1 // pred_check_branch
      %1495 = sbr.rel (0) target = $region49
    $region48: #{base_neural_net_forward.1} parent=1 // pred_region
      _
    $region49: #{base_neural_net_forward.1} parent=1 // pred_fallthru
      _
    %1496 = vsyncpa [#allocation3], 1
    %1497 = vsyncpa [#allocation5], 1

</llo_original>
